<compile_context>
chip_gen: v7x
topology: tpu7x:2x2x1
jax: 0.10.0
libtpu: 0.0.40
codegen_flags: <defaults>
</compile_context>

<pallas_src>
import jax
import jax.numpy as jnp
from jax.experimental import pallas as pl
from jax.experimental.pallas import tpu as pltpu


# ----------------------------------------------------------------------------
# tiling helpers
# ----------------------------------------------------------------------------
def _pick_tile(dim, pref, gran):
    """Largest tile <= pref that is a multiple of `gran` and divides `dim`;
    falls back to the full dim (a full-extent block is always legal)."""
    if dim <= pref:
        return dim
    t = (pref // gran) * gran
    while t >= gran:
        if dim % t == 0:
            return t
        t -= gran
    return dim


def _pick_time_chunk(T):
    """Time steps per grid invocation (and zero-padded sequence length).

    TT is either the full (un-padded) T or 32 (multiple of 16 so a bf16 output
    block with TT on the sublane axis stays tile-aligned)."""
    if T <= 32:
        return T, T
    tt = 32
    t_pad = ((T + tt - 1) // tt) * tt
    return tt, t_pad


# ----------------------------------------------------------------------------
# Tiled GEMM + bias kernel (hoisted input and vocab projections)
# ----------------------------------------------------------------------------
def _matmul_bias_kernel(a_ref, b_ref, bias_ref, o_ref):
    o_ref[...] = (
        jnp.dot(a_ref[...], b_ref[...], preferred_element_type=jnp.float32)
        + bias_ref[...]
    ).astype(o_ref.dtype)


def _matmul_bias(a, b, bias, *, tm_pref=256, tn_pref=512):
    """(M, K) @ (K, N) + (1, N) -> (M, N) f32.  Operands streamed as bf16."""
    M, K = a.shape
    _, N = b.shape
    tm = _pick_tile(M, tm_pref, 8)
    tn = _pick_tile(N, tn_pref, 128)
    a16 = a.astype(jnp.bfloat16)        # no-op if already bf16
    b16 = b.astype(jnp.bfloat16)
    bias32 = bias.astype(jnp.float32)
    return pl.pallas_call(
        _matmul_bias_kernel,
        out_shape=jax.ShapeDtypeStruct((M, N), jnp.float32),
        grid_spec=pltpu.PrefetchScalarGridSpec(
            num_scalar_prefetch=0,
            grid=(M // tm, N // tn),
            in_specs=[
                pl.BlockSpec((tm, K), lambda i, j: (i, 0)),     # A tile
                pl.BlockSpec((K, tn), lambda i, j: (0, j)),     # B tile
                pl.BlockSpec((1, tn), lambda i, j: (0, j)),     # bias tile
            ],
            out_specs=pl.BlockSpec((tm, tn), lambda i, j: (i, j)),
        ),
        compiler_params=pltpu.CompilerParams(
            dimension_semantics=("parallel", "parallel"),
        ),
    )(a16, b16, bias32)


# ----------------------------------------------------------------------------
# Recurrent kernel: TT LSTM steps per grid invocation (only h @ W_hh per step)
# ----------------------------------------------------------------------------
def _lstm_recurrence_kernel(gx_ref,     # (B, TT, 4H) f32  precomputed x@W_ih + b
                            w_hh_ref,   # (H, 4H)     bf16  (resident across grid)
                            h_out_ref,  # (B, TT, H)  bf16  hidden states (batch-first)
                            h_sc,       # scratch (B, H) f32
                            c_sc):      # scratch (B, H) f32
    @pl.when(pl.program_id(0) == 0)
    def _():
        h_sc[...] = jnp.zeros_like(h_sc)
        c_sc[...] = jnp.zeros_like(c_sc)

    TT = gx_ref.shape[1]
    H = h_sc.shape[-1]
    w_hh = w_hh_ref[...]          # hoisted load, reused across all TT steps

    # Fully-unrolled inner loop over the time chunk (static indices -> static
    # slices; gives the scheduler visibility across consecutive steps and
    # amortizes the per-grid-step overhead over TT steps).  The loop is a true
    # recurrence: each step depends on h_sc/c_sc written by the previous one.
    for s in range(TT):
        gates = gx_ref[:, s, :] + jnp.dot(
            h_sc[...].astype(jnp.bfloat16), w_hh,
            preferred_element_type=jnp.float32)                 # (B, 4H) f32

        # PyTorch gate order: i, f, g, o.
        # TODO(synk): with H not a multiple of 128 these lane slices pay a
        # relayout; a gate-major (.., 4, H) layout would avoid it.
        i_g = jax.nn.sigmoid(gates[:, 0 * H:1 * H])
        f_g = jax.nn.sigmoid(gates[:, 1 * H:2 * H])
        g_g = jnp.tanh(gates[:, 2 * H:3 * H])
        o_g = jax.nn.sigmoid(gates[:, 3 * H:4 * H])

        c_new = f_g * c_sc[...] + i_g * g_g
        h_new = o_g * jnp.tanh(c_new)
        c_sc[...] = c_new
        h_sc[...] = h_new
        h_out_ref[:, s, :] = h_new.astype(h_out_ref.dtype)


# ----------------------------------------------------------------------------
# Wrapper (embedding lookup + concat glue, then the three Pallas stages)
# ----------------------------------------------------------------------------
@jax.jit
def decoder_lstm_forward(features, captions, params):
    """features: (B, E) f32, captions: (B, Tc) i32.  Returns (B, Tc, V) f32."""
    emb_table = params["embedding"]                               # (V, E)
    embeds = jnp.take(emb_table, captions[:, :-1], axis=0)        # (B, Tc-1, E)
    x = jnp.concatenate([features[:, None, :], embeds], axis=1)   # (B, T, E)
    x = x.astype(jnp.float32)

    B, T, E = x.shape
    H = params["w_hh"].shape[0]
    V = params["w_fc"].shape[1]

    # (1) Hoisted input projection: one big GEMM over all time steps.
    gates_x = _matmul_bias(x.reshape(B * T, E), params["w_ih"], params["b"])
    gates_x = gates_x.reshape(B, T, 4 * H)                        # (B, T, 4H) f32

    # (2) Recurrence, TT time steps per grid invocation (time axis padded to a
    #     multiple of TT with zeros; padded steps are discarded).
    TT, T_pad = _pick_time_chunk(T)
    if T_pad != T:
        gates_x = jnp.pad(gates_x, ((0, 0), (0, T_pad - T), (0, 0)))
    w_hh16 = params["w_hh"].astype(jnp.bfloat16)

    hidden = pl.pallas_call(
        _lstm_recurrence_kernel,
        out_shape=jax.ShapeDtypeStruct((B, T_pad, H), jnp.bfloat16),
        grid_spec=pltpu.PrefetchScalarGridSpec(
            num_scalar_prefetch=0,
            grid=(T_pad // TT,),
            in_specs=[
                pl.BlockSpec((B, TT, 4 * H), lambda n: (0, n, 0)),  # gates chunk
                pl.BlockSpec((H, 4 * H), lambda n: (0, 0)),         # W_hh (resident)
            ],
            out_specs=pl.BlockSpec((B, TT, H), lambda n: (0, n, 0)),
            scratch_shapes=[
                pltpu.VMEM((B, H), jnp.float32),   # h state (persists across grid)
                pltpu.VMEM((B, H), jnp.float32),   # c state (persists across grid)
            ],
        ),
        compiler_params=pltpu.CompilerParams(
            dimension_semantics=("arbitrary",),    # sequential / recurrent axis
        ),
    )(gates_x, w_hh16)
    if T_pad != T:
        hidden = hidden[:, :T, :]

    # TODO(synk): dropout applied as identity (eval-mode semantics); training-mode
    # stochastic dropout is omitted.

    # (3) Hoisted vocab projection as a tiled, fully-parallel GEMM
    #     (hidden is already bf16 -> streamed straight in, no extra cast pass).
    logits = _matmul_bias(hidden.reshape(B * T, H), params["w_fc"], params["b_fc"])
    return logits.reshape(B, T, V)


# ----------------------------------------------------------------------------
# Pure-JAX f32 reference (for correctness check)
# ----------------------------------------------------------------------------
def decoder_lstm_reference(features, captions, params):
    emb = jnp.take(params["embedding"], captions[:, :-1], axis=0)
    x = jnp.concatenate([features[:, None, :], emb], axis=1)      # (B, T, E)
    B, T, E = x.shape
    H = params["w_hh"].shape[0]

    def step(carry, x_t):
        h, c = carry
        gates = x_t @ params["w_ih"] + h @ params["w_hh"] + params["b"][0]
        i_g = jax.nn.sigmoid(gates[:, 0 * H:1 * H])
        f_g = jax.nn.sigmoid(gates[:, 1 * H:2 * H])
        g_g = jnp.tanh(gates[:, 2 * H:3 * H])
        o_g = jax.nn.sigmoid(gates[:, 3 * H:4 * H])
        c = f_g * c + i_g * g_g
        h = o_g * jnp.tanh(c)
        return (h, c), h

    h0 = jnp.zeros((B, H), jnp.float32)
    c0 = jnp.zeros((B, H), jnp.float32)
    _, hs = jax.lax.scan(step, (h0, c0), jnp.transpose(x, (1, 0, 2)))
    hs = jnp.transpose(hs, (1, 0, 2))                             # (B, T, H)
    return hs @ params["w_fc"] + params["b_fc"][0]                # (B, T, V)


# ----------------------------------------------------------------------------
# Parameter construction (deterministic, synthetic; stored in f32)
# ----------------------------------------------------------------------------
def make_params(key, embed_size, hidden_size, vocab_size):
    ks = jax.random.split(key, 7)
    s = 0.1
    return {
        "embedding": s * jax.random.normal(ks[0], (vocab_size, embed_size), jnp.float32),
        # stored pre-transposed relative to PyTorch (weight_ih_l0 is (4H, E)):
        "w_ih": s * jax.random.normal(ks[1], (embed_size, 4 * hidden_size), jnp.float32),
        "w_hh": s * jax.random.normal(ks[2], (hidden_size, 4 * hidden_size), jnp.float32),
        # combined bias b_ih + b_hh, kept 2-D for TPU layout:
        "b": s * jax.random.normal(ks[3], (1, 4 * hidden_size), jnp.float32),
        "w_fc": s * jax.random.normal(ks[4], (hidden_size, vocab_size), jnp.float32),
        "b_fc": s * jax.random.normal(ks[5], (1, vocab_size), jnp.float32),
    }


if __name__ == "__main__":
    # Small, module-consistent shapes.
    B, T_cap = 2, 8          # batch, caption length (sequence length == T_cap)
    E, H, V = 32, 32, 128    # embed_size, hidden_size, vocab_size

    key = jax.random.PRNGKey(0)
    k_feat, k_cap, k_par = jax.random.split(key, 3)

    params = make_params(k_par, E, H, V)
    features = jax.random.normal(k_feat, (B, E), jnp.float32)
    captions = jax.random.randint(k_cap, (B, T_cap), 0, V, dtype=jnp.int32)

    out = decoder_lstm_forward(features, captions, params)
    out = jax.block_until_ready(out)
    assert out.shape == (B, T_cap, V), out.shape

    ref = decoder_lstm_reference(features, captions, params)
    # bf16 matmul operands (f32 accumulate) -> loosened tolerance vs pure-f32 ref.
    assert jnp.allclose(out, ref, atol=2e-2, rtol=2e-2), (
        float(jnp.max(jnp.abs(out - ref))))

    print("KERNEL_OK")
</pallas_src>

<mosaic_0001>
module attributes {stable_mosaic.version = 11 : i64} {
  func.func @_lstm_recurrence_kernel(%arg0: i32, %arg1: memref<2x8x128xf32, #tpu.memory_space<vmem>>, %arg2: memref<32x128xbf16, #tpu.memory_space<vmem>>, %arg3: memref<2x8x32xbf16, #tpu.memory_space<vmem>>, %arg4: memref<2x32xf32, #tpu.memory_space<vmem>>, %arg5: memref<2x32xf32, #tpu.memory_space<vmem>>) attributes {dimension_semantics = [#tpu.dimension_semantics<arbitrary>], iteration_bounds = array<i64: 1>, scalar_prefetch = 0 : i64, scratch_operands = 2 : i64, tpu.core_type = #tpu.core_type<tc>, window_params = [{transform_indices = @transform_0, window_bounds = array<i64: 2, 8, 128>}, {pipeline_mode = #tpu.pipeline_mode<synchronous>, transform_indices = @transform_1, window_bounds = array<i64: 32, 128>}, {transform_indices = @transform_2, window_bounds = array<i64: 2, 8, 32>}]} {
    %c0_i32 = arith.constant 0 : i32
    %0 = arith.cmpi eq, %arg0, %c0_i32 : i32
    %1 = arith.extui %0 : i1 to i32
    %c0_i32_0 = arith.constant 0 : i32
    %2 = arith.cmpi ne, %1, %c0_i32_0 : i32
    scf.if %2 {
      %cst_138 = arith.constant 0.000000e+00 : f32
      %308 = vector.broadcast %cst_138 : f32 to vector<2x32xf32>
      %c0_139 = arith.constant 0 : index
      %c0_140 = arith.constant 0 : index
      %309 = vector.load %arg4[%c0_139, %c0_140] : memref<2x32xf32, #tpu.memory_space<vmem>>, vector<2x32xf32>
      tpu.vector_store %arg4[%c0_139, %c0_140], %308 {strides = array<i32>} : memref<2x32xf32, #tpu.memory_space<vmem>>, vector<2x32xf32>,
      %cst_141 = arith.constant 0.000000e+00 : f32
      %310 = vector.broadcast %cst_141 : f32 to vector<2x32xf32>
      %c0_142 = arith.constant 0 : index
      %c0_143 = arith.constant 0 : index
      %311 = vector.load %arg5[%c0_142, %c0_143] : memref<2x32xf32, #tpu.memory_space<vmem>>, vector<2x32xf32>
      tpu.vector_store %arg5[%c0_142, %c0_143], %310 {strides = array<i32>} : memref<2x32xf32, #tpu.memory_space<vmem>>, vector<2x32xf32>,
    } else {
    }
    %c0 = arith.constant 0 : index
    %c0_1 = arith.constant 0 : index
    %3 = vector.load %arg2[%c0, %c0_1] : memref<32x128xbf16, #tpu.memory_space<vmem>>, vector<32x128xbf16>
    %c0_2 = arith.constant 0 : index
    %c0_3 = arith.constant 0 : index
    %c0_4 = arith.constant 0 : index
    %4 = vector.load %arg1[%c0_2, %c0_3, %c0_4] : memref<2x8x128xf32, #tpu.memory_space<vmem>>, vector<2x1x128xf32>
    %5 = vector.shape_cast %4 : vector<2x1x128xf32> to vector<2x128xf32>
    %c0_5 = arith.constant 0 : index
    %c0_6 = arith.constant 0 : index
    %6 = vector.load %arg4[%c0_5, %c0_6] : memref<2x32xf32, #tpu.memory_space<vmem>>, vector<2x32xf32>
    %7 = arith.truncf %6 : vector<2x32xf32> to vector<2x32xbf16>
    %cst = arith.constant dense<0.000000e+00> : vector<2x128xf32>
    %8 = tpu.matmul %7, %3, %cst {dimension_numbers = #tpu.dot_dimension_numbers<[1], [0], [0], [1], [0, 0, 1, 1], [], []>} : vector<2x32xbf16>, vector<32x128xbf16>, vector<2x128xf32> -> vector<2x128xf32>
    %9 = arith.addf %5, %8 : vector<2x128xf32>
    %10 = vector.extract_strided_slice %9 {offsets = [0, 0], sizes = [2, 32], strides = [1, 1]} : vector<2x128xf32> to vector<2x32xf32>
    %11 = arith.negf %10 : vector<2x32xf32>
    %12 = math.exp %11 : vector<2x32xf32>
    %cst_7 = arith.constant 1.000000e+00 : f32
    %13 = vector.broadcast %cst_7 : f32 to vector<2x32xf32>
    %14 = arith.addf %13, %12 : vector<2x32xf32>
    %15 = arith.divf %13, %14 : vector<2x32xf32>
    %16 = vector.extract_strided_slice %9 {offsets = [0, 32], sizes = [2, 32], strides = [1, 1]} : vector<2x128xf32> to vector<2x32xf32>
    %17 = arith.negf %16 : vector<2x32xf32>
    %18 = math.exp %17 : vector<2x32xf32>
    %cst_8 = arith.constant 1.000000e+00 : f32
    %19 = vector.broadcast %cst_8 : f32 to vector<2x32xf32>
    %20 = arith.addf %19, %18 : vector<2x32xf32>
    %21 = arith.divf %19, %20 : vector<2x32xf32>
    %22 = vector.extract_strided_slice %9 {offsets = [0, 64], sizes = [2, 32], strides = [1, 1]} : vector<2x128xf32> to vector<2x32xf32>
    %23 = math.tanh %22 : vector<2x32xf32>
    %24 = vector.extract_strided_slice %9 {offsets = [0, 96], sizes = [2, 32], strides = [1, 1]} : vector<2x128xf32> to vector<2x32xf32>
    %25 = arith.negf %24 : vector<2x32xf32>
    %26 = math.exp %25 : vector<2x32xf32>
    %cst_9 = arith.constant 1.000000e+00 : f32
    %27 = vector.broadcast %cst_9 : f32 to vector<2x32xf32>
    %28 = arith.addf %27, %26 : vector<2x32xf32>
    %29 = arith.divf %27, %28 : vector<2x32xf32>
    %c0_10 = arith.constant 0 : index
    %c0_11 = arith.constant 0 : index
    %30 = vector.load %arg5[%c0_10, %c0_11] : memref<2x32xf32, #tpu.memory_space<vmem>>, vector<2x32xf32>
    %31 = arith.mulf %21, %30 : vector<2x32xf32>
    %32 = arith.mulf %15, %23 : vector<2x32xf32>
    %33 = arith.addf %31, %32 : vector<2x32xf32>
    %34 = math.tanh %33 : vector<2x32xf32>
    %35 = arith.mulf %29, %34 : vector<2x32xf32>
    %c0_12 = arith.constant 0 : index
    %c0_13 = arith.constant 0 : index
    %36 = vector.load %arg5[%c0_12, %c0_13] : memref<2x32xf32, #tpu.memory_space<vmem>>, vector<2x32xf32>
    tpu.vector_store %arg5[%c0_12, %c0_13], %33 {strides = array<i32>} : memref<2x32xf32, #tpu.memory_space<vmem>>, vector<2x32xf32>,
    %c0_14 = arith.constant 0 : index
    %c0_15 = arith.constant 0 : index
    %37 = vector.load %arg4[%c0_14, %c0_15] : memref<2x32xf32, #tpu.memory_space<vmem>>, vector<2x32xf32>
    tpu.vector_store %arg4[%c0_14, %c0_15], %35 {strides = array<i32>} : memref<2x32xf32, #tpu.memory_space<vmem>>, vector<2x32xf32>,
    %38 = arith.truncf %35 : vector<2x32xf32> to vector<2x32xbf16>
    %c0_16 = arith.constant 0 : index
    %c0_17 = arith.constant 0 : index
    %c0_18 = arith.constant 0 : index
    %39 = vector.load %arg3[%c0_16, %c0_17, %c0_18] : memref<2x8x32xbf16, #tpu.memory_space<vmem>>, vector<2x1x32xbf16>
    %40 = vector.shape_cast %39 : vector<2x1x32xbf16> to vector<2x32xbf16>
    %41 = vector.shape_cast %38 : vector<2x32xbf16> to vector<2x1x32xbf16>
    tpu.vector_store %arg3[%c0_16, %c0_17, %c0_18], %41 {strides = array<i32>} : memref<2x8x32xbf16, #tpu.memory_space<vmem>>, vector<2x1x32xbf16>,
    %c0_19 = arith.constant 0 : index
    %c1 = arith.constant 1 : index
    %c0_20 = arith.constant 0 : index
    %42 = vector.load %arg1[%c0_19, %c1, %c0_20] : memref<2x8x128xf32, #tpu.memory_space<vmem>>, vector<2x1x128xf32>
    %43 = vector.shape_cast %42 : vector<2x1x128xf32> to vector<2x128xf32>
    %c0_21 = arith.constant 0 : index
    %c0_22 = arith.constant 0 : index
    %44 = vector.load %arg4[%c0_21, %c0_22] : memref<2x32xf32, #tpu.memory_space<vmem>>, vector<2x32xf32>
    %45 = arith.truncf %44 : vector<2x32xf32> to vector<2x32xbf16>
    %cst_23 = arith.constant dense<0.000000e+00> : vector<2x128xf32>
    %46 = tpu.matmul %45, %3, %cst_23 {dimension_numbers = #tpu.dot_dimension_numbers<[1], [0], [0], [1], [0, 0, 1, 1], [], []>} : vector<2x32xbf16>, vector<32x128xbf16>, vector<2x128xf32> -> vector<2x128xf32>
    %47 = arith.addf %43, %46 : vector<2x128xf32>
    %48 = vector.extract_strided_slice %47 {offsets = [0, 0], sizes = [2, 32], strides = [1, 1]} : vector<2x128xf32> to vector<2x32xf32>
    %49 = arith.negf %48 : vector<2x32xf32>
    %50 = math.exp %49 : vector<2x32xf32>
    %cst_24 = arith.constant 1.000000e+00 : f32
    %51 = vector.broadcast %cst_24 : f32 to vector<2x32xf32>
    %52 = arith.addf %51, %50 : vector<2x32xf32>
    %53 = arith.divf %51, %52 : vector<2x32xf32>
    %54 = vector.extract_strided_slice %47 {offsets = [0, 32], sizes = [2, 32], strides = [1, 1]} : vector<2x128xf32> to vector<2x32xf32>
    %55 = arith.negf %54 : vector<2x32xf32>
    %56 = math.exp %55 : vector<2x32xf32>
    %cst_25 = arith.constant 1.000000e+00 : f32
    %57 = vector.broadcast %cst_25 : f32 to vector<2x32xf32>
    %58 = arith.addf %57, %56 : vector<2x32xf32>
    %59 = arith.divf %57, %58 : vector<2x32xf32>
    %60 = vector.extract_strided_slice %47 {offsets = [0, 64], sizes = [2, 32], strides = [1, 1]} : vector<2x128xf32> to vector<2x32xf32>
    %61 = math.tanh %60 : vector<2x32xf32>
    %62 = vector.extract_strided_slice %47 {offsets = [0, 96], sizes = [2, 32], strides = [1, 1]} : vector<2x128xf32> to vector<2x32xf32>
    %63 = arith.negf %62 : vector<2x32xf32>
    %64 = math.exp %63 : vector<2x32xf32>
    %cst_26 = arith.constant 1.000000e+00 : f32
    %65 = vector.broadcast %cst_26 : f32 to vector<2x32xf32>
    %66 = arith.addf %65, %64 : vector<2x32xf32>
    %67 = arith.divf %65, %66 : vector<2x32xf32>
    %c0_27 = arith.constant 0 : index
    %c0_28 = arith.constant 0 : index
    %68 = vector.load %arg5[%c0_27, %c0_28] : memref<2x32xf32, #tpu.memory_space<vmem>>, vector<2x32xf32>
    %69 = arith.mulf %59, %68 : vector<2x32xf32>
    %70 = arith.mulf %53, %61 : vector<2x32xf32>
    %71 = arith.addf %69, %70 : vector<2x32xf32>
    %72 = math.tanh %71 : vector<2x32xf32>
    %73 = arith.mulf %67, %72 : vector<2x32xf32>
    %c0_29 = arith.constant 0 : index
    %c0_30 = arith.constant 0 : index
    %74 = vector.load %arg5[%c0_29, %c0_30] : memref<2x32xf32, #tpu.memory_space<vmem>>, vector<2x32xf32>
    tpu.vector_store %arg5[%c0_29, %c0_30], %71 {strides = array<i32>} : memref<2x32xf32, #tpu.memory_space<vmem>>, vector<2x32xf32>,
    %c0_31 = arith.constant 0 : index
    %c0_32 = arith.constant 0 : index
    %75 = vector.load %arg4[%c0_31, %c0_32] : memref<2x32xf32, #tpu.memory_space<vmem>>, vector<2x32xf32>
    tpu.vector_store %arg4[%c0_31, %c0_32], %73 {strides = array<i32>} : memref<2x32xf32, #tpu.memory_space<vmem>>, vector<2x32xf32>,
    %76 = arith.truncf %73 : vector<2x32xf32> to vector<2x32xbf16>
    %c0_33 = arith.constant 0 : index
    %c1_34 = arith.constant 1 : index
    %c0_35 = arith.constant 0 : index
    %77 = vector.load %arg3[%c0_33, %c1_34, %c0_35] : memref<2x8x32xbf16, #tpu.memory_space<vmem>>, vector<2x1x32xbf16>
    %78 = vector.shape_cast %77 : vector<2x1x32xbf16> to vector<2x32xbf16>
    %79 = vector.shape_cast %76 : vector<2x32xbf16> to vector<2x1x32xbf16>
    tpu.vector_store %arg3[%c0_33, %c1_34, %c0_35], %79 {strides = array<i32>} : memref<2x8x32xbf16, #tpu.memory_space<vmem>>, vector<2x1x32xbf16>,
    %c0_36 = arith.constant 0 : index
    %c2 = arith.constant 2 : index
    %c0_37 = arith.constant 0 : index
    %80 = vector.load %arg1[%c0_36, %c2, %c0_37] : memref<2x8x128xf32, #tpu.memory_space<vmem>>, vector<2x1x128xf32>
    %81 = vector.shape_cast %80 : vector<2x1x128xf32> to vector<2x128xf32>
    %c0_38 = arith.constant 0 : index
    %c0_39 = arith.constant 0 : index
    %82 = vector.load %arg4[%c0_38, %c0_39] : memref<2x32xf32, #tpu.memory_space<vmem>>, vector<2x32xf32>
    %83 = arith.truncf %82 : vector<2x32xf32> to vector<2x32xbf16>
    %cst_40 = arith.constant dense<0.000000e+00> : vector<2x128xf32>
    %84 = tpu.matmul %83, %3, %cst_40 {dimension_numbers = #tpu.dot_dimension_numbers<[1], [0], [0], [1], [0, 0, 1, 1], [], []>} : vector<2x32xbf16>, vector<32x128xbf16>, vector<2x128xf32> -> vector<2x128xf32>
    %85 = arith.addf %81, %84 : vector<2x128xf32>
    %86 = vector.extract_strided_slice %85 {offsets = [0, 0], sizes = [2, 32], strides = [1, 1]} : vector<2x128xf32> to vector<2x32xf32>
    %87 = arith.negf %86 : vector<2x32xf32>
    %88 = math.exp %87 : vector<2x32xf32>
    %cst_41 = arith.constant 1.000000e+00 : f32
    %89 = vector.broadcast %cst_41 : f32 to vector<2x32xf32>
    %90 = arith.addf %89, %88 : vector<2x32xf32>
    %91 = arith.divf %89, %90 : vector<2x32xf32>
    %92 = vector.extract_strided_slice %85 {offsets = [0, 32], sizes = [2, 32], strides = [1, 1]} : vector<2x128xf32> to vector<2x32xf32>
    %93 = arith.negf %92 : vector<2x32xf32>
    %94 = math.exp %93 : vector<2x32xf32>
    %cst_42 = arith.constant 1.000000e+00 : f32
    %95 = vector.broadcast %cst_42 : f32 to vector<2x32xf32>
    %96 = arith.addf %95, %94 : vector<2x32xf32>
    %97 = arith.divf %95, %96 : vector<2x32xf32>
    %98 = vector.extract_strided_slice %85 {offsets = [0, 64], sizes = [2, 32], strides = [1, 1]} : vector<2x128xf32> to vector<2x32xf32>
    %99 = math.tanh %98 : vector<2x32xf32>
    %100 = vector.extract_strided_slice %85 {offsets = [0, 96], sizes = [2, 32], strides = [1, 1]} : vector<2x128xf32> to vector<2x32xf32>
    %101 = arith.negf %100 : vector<2x32xf32>
    %102 = math.exp %101 : vector<2x32xf32>
    %cst_43 = arith.constant 1.000000e+00 : f32
    %103 = vector.broadcast %cst_43 : f32 to vector<2x32xf32>
    %104 = arith.addf %103, %102 : vector<2x32xf32>
    %105 = arith.divf %103, %104 : vector<2x32xf32>
    %c0_44 = arith.constant 0 : index
    %c0_45 = arith.constant 0 : index
    %106 = vector.load %arg5[%c0_44, %c0_45] : memref<2x32xf32, #tpu.memory_space<vmem>>, vector<2x32xf32>
    %107 = arith.mulf %97, %106 : vector<2x32xf32>
    %108 = arith.mulf %91, %99 : vector<2x32xf32>
    %109 = arith.addf %107, %108 : vector<2x32xf32>
    %110 = math.tanh %109 : vector<2x32xf32>
    %111 = arith.mulf %105, %110 : vector<2x32xf32>
    %c0_46 = arith.constant 0 : index
    %c0_47 = arith.constant 0 : index
    %112 = vector.load %arg5[%c0_46, %c0_47] : memref<2x32xf32, #tpu.memory_space<vmem>>, vector<2x32xf32>
    tpu.vector_store %arg5[%c0_46, %c0_47], %109 {strides = array<i32>} : memref<2x32xf32, #tpu.memory_space<vmem>>, vector<2x32xf32>,
    %c0_48 = arith.constant 0 : index
    %c0_49 = arith.constant 0 : index
    %113 = vector.load %arg4[%c0_48, %c0_49] : memref<2x32xf32, #tpu.memory_space<vmem>>, vector<2x32xf32>
    tpu.vector_store %arg4[%c0_48, %c0_49], %111 {strides = array<i32>} : memref<2x32xf32, #tpu.memory_space<vmem>>, vector<2x32xf32>,
    %114 = arith.truncf %111 : vector<2x32xf32> to vector<2x32xbf16>
    %c0_50 = arith.constant 0 : index
    %c2_51 = arith.constant 2 : index
    %c0_52 = arith.constant 0 : index
    %115 = vector.load %arg3[%c0_50, %c2_51, %c0_52] : memref<2x8x32xbf16, #tpu.memory_space<vmem>>, vector<2x1x32xbf16>
    %116 = vector.shape_cast %115 : vector<2x1x32xbf16> to vector<2x32xbf16>
    %117 = vector.shape_cast %114 : vector<2x32xbf16> to vector<2x1x32xbf16>
    tpu.vector_store %arg3[%c0_50, %c2_51, %c0_52], %117 {strides = array<i32>} : memref<2x8x32xbf16, #tpu.memory_space<vmem>>, vector<2x1x32xbf16>,
    %c0_53 = arith.constant 0 : index
    %c3 = arith.constant 3 : index
    %c0_54 = arith.constant 0 : index
    %118 = vector.load %arg1[%c0_53, %c3, %c0_54] : memref<2x8x128xf32, #tpu.memory_space<vmem>>, vector<2x1x128xf32>
    %119 = vector.shape_cast %118 : vector<2x1x128xf32> to vector<2x128xf32>
    %c0_55 = arith.constant 0 : index
    %c0_56 = arith.constant 0 : index
    %120 = vector.load %arg4[%c0_55, %c0_56] : memref<2x32xf32, #tpu.memory_space<vmem>>, vector<2x32xf32>
    %121 = arith.truncf %120 : vector<2x32xf32> to vector<2x32xbf16>
    %cst_57 = arith.constant dense<0.000000e+00> : vector<2x128xf32>
    %122 = tpu.matmul %121, %3, %cst_57 {dimension_numbers = #tpu.dot_dimension_numbers<[1], [0], [0], [1], [0, 0, 1, 1], [], []>} : vector<2x32xbf16>, vector<32x128xbf16>, vector<2x128xf32> -> vector<2x128xf32>
    %123 = arith.addf %119, %122 : vector<2x128xf32>
    %124 = vector.extract_strided_slice %123 {offsets = [0, 0], sizes = [2, 32], strides = [1, 1]} : vector<2x128xf32> to vector<2x32xf32>
    %125 = arith.negf %124 : vector<2x32xf32>
    %126 = math.exp %125 : vector<2x32xf32>
    %cst_58 = arith.constant 1.000000e+00 : f32
    %127 = vector.broadcast %cst_58 : f32 to vector<2x32xf32>
    %128 = arith.addf %127, %126 : vector<2x32xf32>
    %129 = arith.divf %127, %128 : vector<2x32xf32>
    %130 = vector.extract_strided_slice %123 {offsets = [0, 32], sizes = [2, 32], strides = [1, 1]} : vector<2x128xf32> to vector<2x32xf32>
    %131 = arith.negf %130 : vector<2x32xf32>
    %132 = math.exp %131 : vector<2x32xf32>
    %cst_59 = arith.constant 1.000000e+00 : f32
    %133 = vector.broadcast %cst_59 : f32 to vector<2x32xf32>
    %134 = arith.addf %133, %132 : vector<2x32xf32>
    %135 = arith.divf %133, %134 : vector<2x32xf32>
    %136 = vector.extract_strided_slice %123 {offsets = [0, 64], sizes = [2, 32], strides = [1, 1]} : vector<2x128xf32> to vector<2x32xf32>
    %137 = math.tanh %136 : vector<2x32xf32>
    %138 = vector.extract_strided_slice %123 {offsets = [0, 96], sizes = [2, 32], strides = [1, 1]} : vector<2x128xf32> to vector<2x32xf32>
    %139 = arith.negf %138 : vector<2x32xf32>
    %140 = math.exp %139 : vector<2x32xf32>
    %cst_60 = arith.constant 1.000000e+00 : f32
    %141 = vector.broadcast %cst_60 : f32 to vector<2x32xf32>
    %142 = arith.addf %141, %140 : vector<2x32xf32>
    %143 = arith.divf %141, %142 : vector<2x32xf32>
    %c0_61 = arith.constant 0 : index
    %c0_62 = arith.constant 0 : index
    %144 = vector.load %arg5[%c0_61, %c0_62] : memref<2x32xf32, #tpu.memory_space<vmem>>, vector<2x32xf32>
    %145 = arith.mulf %135, %144 : vector<2x32xf32>
    %146 = arith.mulf %129, %137 : vector<2x32xf32>
    %147 = arith.addf %145, %146 : vector<2x32xf32>
    %148 = math.tanh %147 : vector<2x32xf32>
    %149 = arith.mulf %143, %148 : vector<2x32xf32>
    %c0_63 = arith.constant 0 : index
    %c0_64 = arith.constant 0 : index
    %150 = vector.load %arg5[%c0_63, %c0_64] : memref<2x32xf32, #tpu.memory_space<vmem>>, vector<2x32xf32>
    tpu.vector_store %arg5[%c0_63, %c0_64], %147 {strides = array<i32>} : memref<2x32xf32, #tpu.memory_space<vmem>>, vector<2x32xf32>,
    %c0_65 = arith.constant 0 : index
    %c0_66 = arith.constant 0 : index
    %151 = vector.load %arg4[%c0_65, %c0_66] : memref<2x32xf32, #tpu.memory_space<vmem>>, vector<2x32xf32>
    tpu.vector_store %arg4[%c0_65, %c0_66], %149 {strides = array<i32>} : memref<2x32xf32, #tpu.memory_space<vmem>>, vector<2x32xf32>,
    %152 = arith.truncf %149 : vector<2x32xf32> to vector<2x32xbf16>
    %c0_67 = arith.constant 0 : index
    %c3_68 = arith.constant 3 : index
    %c0_69 = arith.constant 0 : index
    %153 = vector.load %arg3[%c0_67, %c3_68, %c0_69] : memref<2x8x32xbf16, #tpu.memory_space<vmem>>, vector<2x1x32xbf16>
    %154 = vector.shape_cast %153 : vector<2x1x32xbf16> to vector<2x32xbf16>
    %155 = vector.shape_cast %152 : vector<2x32xbf16> to vector<2x1x32xbf16>
    tpu.vector_store %arg3[%c0_67, %c3_68, %c0_69], %155 {strides = array<i32>} : memref<2x8x32xbf16, #tpu.memory_space<vmem>>, vector<2x1x32xbf16>,
    %c0_70 = arith.constant 0 : index
    %c4 = arith.constant 4 : index
    %c0_71 = arith.constant 0 : index
    %156 = vector.load %arg1[%c0_70, %c4, %c0_71] : memref<2x8x128xf32, #tpu.memory_space<vmem>>, vector<2x1x128xf32>
    %157 = vector.shape_cast %156 : vector<2x1x128xf32> to vector<2x128xf32>
    %c0_72 = arith.constant 0 : index
    %c0_73 = arith.constant 0 : index
    %158 = vector.load %arg4[%c0_72, %c0_73] : memref<2x32xf32, #tpu.memory_space<vmem>>, vector<2x32xf32>
    %159 = arith.truncf %158 : vector<2x32xf32> to vector<2x32xbf16>
    %cst_74 = arith.constant dense<0.000000e+00> : vector<2x128xf32>
    %160 = tpu.matmul %159, %3, %cst_74 {dimension_numbers = #tpu.dot_dimension_numbers<[1], [0], [0], [1], [0, 0, 1, 1], [], []>} : vector<2x32xbf16>, vector<32x128xbf16>, vector<2x128xf32> -> vector<2x128xf32>
    %161 = arith.addf %157, %160 : vector<2x128xf32>
    %162 = vector.extract_strided_slice %161 {offsets = [0, 0], sizes = [2, 32], strides = [1, 1]} : vector<2x128xf32> to vector<2x32xf32>
    %163 = arith.negf %162 : vector<2x32xf32>
    %164 = math.exp %163 : vector<2x32xf32>
    %cst_75 = arith.constant 1.000000e+00 : f32
    %165 = vector.broadcast %cst_75 : f32 to vector<2x32xf32>
    %166 = arith.addf %165, %164 : vector<2x32xf32>
    %167 = arith.divf %165, %166 : vector<2x32xf32>
    %168 = vector.extract_strided_slice %161 {offsets = [0, 32], sizes = [2, 32], strides = [1, 1]} : vector<2x128xf32> to vector<2x32xf32>
    %169 = arith.negf %168 : vector<2x32xf32>
    %170 = math.exp %169 : vector<2x32xf32>
    %cst_76 = arith.constant 1.000000e+00 : f32
    %171 = vector.broadcast %cst_76 : f32 to vector<2x32xf32>
    %172 = arith.addf %171, %170 : vector<2x32xf32>
    %173 = arith.divf %171, %172 : vector<2x32xf32>
    %174 = vector.extract_strided_slice %161 {offsets = [0, 64], sizes = [2, 32], strides = [1, 1]} : vector<2x128xf32> to vector<2x32xf32>
    %175 = math.tanh %174 : vector<2x32xf32>
    %176 = vector.extract_strided_slice %161 {offsets = [0, 96], sizes = [2, 32], strides = [1, 1]} : vector<2x128xf32> to vector<2x32xf32>
    %177 = arith.negf %176 : vector<2x32xf32>
    %178 = math.exp %177 : vector<2x32xf32>
    %cst_77 = arith.constant 1.000000e+00 : f32
    %179 = vector.broadcast %cst_77 : f32 to vector<2x32xf32>
    %180 = arith.addf %179, %178 : vector<2x32xf32>
    %181 = arith.divf %179, %180 : vector<2x32xf32>
    %c0_78 = arith.constant 0 : index
    %c0_79 = arith.constant 0 : index
    %182 = vector.load %arg5[%c0_78, %c0_79] : memref<2x32xf32, #tpu.memory_space<vmem>>, vector<2x32xf32>
    %183 = arith.mulf %173, %182 : vector<2x32xf32>
    %184 = arith.mulf %167, %175 : vector<2x32xf32>
    %185 = arith.addf %183, %184 : vector<2x32xf32>
    %186 = math.tanh %185 : vector<2x32xf32>
    %187 = arith.mulf %181, %186 : vector<2x32xf32>
    %c0_80 = arith.constant 0 : index
    %c0_81 = arith.constant 0 : index
    %188 = vector.load %arg5[%c0_80, %c0_81] : memref<2x32xf32, #tpu.memory_space<vmem>>, vector<2x32xf32>
    tpu.vector_store %arg5[%c0_80, %c0_81], %185 {strides = array<i32>} : memref<2x32xf32, #tpu.memory_space<vmem>>, vector<2x32xf32>,
    %c0_82 = arith.constant 0 : index
    %c0_83 = arith.constant 0 : index
    %189 = vector.load %arg4[%c0_82, %c0_83] : memref<2x32xf32, #tpu.memory_space<vmem>>, vector<2x32xf32>
    tpu.vector_store %arg4[%c0_82, %c0_83], %187 {strides = array<i32>} : memref<2x32xf32, #tpu.memory_space<vmem>>, vector<2x32xf32>,
    %190 = arith.truncf %187 : vector<2x32xf32> to vector<2x32xbf16>
    %c0_84 = arith.constant 0 : index
    %c4_85 = arith.constant 4 : index
    %c0_86 = arith.constant 0 : index
    %191 = vector.load %arg3[%c0_84, %c4_85, %c0_86] : memref<2x8x32xbf16, #tpu.memory_space<vmem>>, vector<2x1x32xbf16>
    %192 = vector.shape_cast %191 : vector<2x1x32xbf16> to vector<2x32xbf16>
    %193 = vector.shape_cast %190 : vector<2x32xbf16> to vector<2x1x32xbf16>
    tpu.vector_store %arg3[%c0_84, %c4_85, %c0_86], %193 {strides = array<i32>} : memref<2x8x32xbf16, #tpu.memory_space<vmem>>, vector<2x1x32xbf16>,
    %c0_87 = arith.constant 0 : index
    %c5 = arith.constant 5 : index
    %c0_88 = arith.constant 0 : index
    %194 = vector.load %arg1[%c0_87, %c5, %c0_88] : memref<2x8x128xf32, #tpu.memory_space<vmem>>, vector<2x1x128xf32>
    %195 = vector.shape_cast %194 : vector<2x1x128xf32> to vector<2x128xf32>
    %c0_89 = arith.constant 0 : index
    %c0_90 = arith.constant 0 : index
    %196 = vector.load %arg4[%c0_89, %c0_90] : memref<2x32xf32, #tpu.memory_space<vmem>>, vector<2x32xf32>
    %197 = arith.truncf %196 : vector<2x32xf32> to vector<2x32xbf16>
    %cst_91 = arith.constant dense<0.000000e+00> : vector<2x128xf32>
    %198 = tpu.matmul %197, %3, %cst_91 {dimension_numbers = #tpu.dot_dimension_numbers<[1], [0], [0], [1], [0, 0, 1, 1], [], []>} : vector<2x32xbf16>, vector<32x128xbf16>, vector<2x128xf32> -> vector<2x128xf32>
    %199 = arith.addf %195, %198 : vector<2x128xf32>
    %200 = vector.extract_strided_slice %199 {offsets = [0, 0], sizes = [2, 32], strides = [1, 1]} : vector<2x128xf32> to vector<2x32xf32>
    %201 = arith.negf %200 : vector<2x32xf32>
    %202 = math.exp %201 : vector<2x32xf32>
    %cst_92 = arith.constant 1.000000e+00 : f32
    %203 = vector.broadcast %cst_92 : f32 to vector<2x32xf32>
    %204 = arith.addf %203, %202 : vector<2x32xf32>
    %205 = arith.divf %203, %204 : vector<2x32xf32>
    %206 = vector.extract_strided_slice %199 {offsets = [0, 32], sizes = [2, 32], strides = [1, 1]} : vector<2x128xf32> to vector<2x32xf32>
    %207 = arith.negf %206 : vector<2x32xf32>
    %208 = math.exp %207 : vector<2x32xf32>
    %cst_93 = arith.constant 1.000000e+00 : f32
    %209 = vector.broadcast %cst_93 : f32 to vector<2x32xf32>
    %210 = arith.addf %209, %208 : vector<2x32xf32>
    %211 = arith.divf %209, %210 : vector<2x32xf32>
    %212 = vector.extract_strided_slice %199 {offsets = [0, 64], sizes = [2, 32], strides = [1, 1]} : vector<2x128xf32> to vector<2x32xf32>
    %213 = math.tanh %212 : vector<2x32xf32>
    %214 = vector.extract_strided_slice %199 {offsets = [0, 96], sizes = [2, 32], strides = [1, 1]} : vector<2x128xf32> to vector<2x32xf32>
    %215 = arith.negf %214 : vector<2x32xf32>
    %216 = math.exp %215 : vector<2x32xf32>
    %cst_94 = arith.constant 1.000000e+00 : f32
    %217 = vector.broadcast %cst_94 : f32 to vector<2x32xf32>
    %218 = arith.addf %217, %216 : vector<2x32xf32>
    %219 = arith.divf %217, %218 : vector<2x32xf32>
    %c0_95 = arith.constant 0 : index
    %c0_96 = arith.constant 0 : index
    %220 = vector.load %arg5[%c0_95, %c0_96] : memref<2x32xf32, #tpu.memory_space<vmem>>, vector<2x32xf32>
    %221 = arith.mulf %211, %220 : vector<2x32xf32>
    %222 = arith.mulf %205, %213 : vector<2x32xf32>
    %223 = arith.addf %221, %222 : vector<2x32xf32>
    %224 = math.tanh %223 : vector<2x32xf32>
    %225 = arith.mulf %219, %224 : vector<2x32xf32>
    %c0_97 = arith.constant 0 : index
    %c0_98 = arith.constant 0 : index
    %226 = vector.load %arg5[%c0_97, %c0_98] : memref<2x32xf32, #tpu.memory_space<vmem>>, vector<2x32xf32>
    tpu.vector_store %arg5[%c0_97, %c0_98], %223 {strides = array<i32>} : memref<2x32xf32, #tpu.memory_space<vmem>>, vector<2x32xf32>,
    %c0_99 = arith.constant 0 : index
    %c0_100 = arith.constant 0 : index
    %227 = vector.load %arg4[%c0_99, %c0_100] : memref<2x32xf32, #tpu.memory_space<vmem>>, vector<2x32xf32>
    tpu.vector_store %arg4[%c0_99, %c0_100], %225 {strides = array<i32>} : memref<2x32xf32, #tpu.memory_space<vmem>>, vector<2x32xf32>,
    %228 = arith.truncf %225 : vector<2x32xf32> to vector<2x32xbf16>
    %c0_101 = arith.constant 0 : index
    %c5_102 = arith.constant 5 : index
    %c0_103 = arith.constant 0 : index
    %229 = vector.load %arg3[%c0_101, %c5_102, %c0_103] : memref<2x8x32xbf16, #tpu.memory_space<vmem>>, vector<2x1x32xbf16>
    %230 = vector.shape_cast %229 : vector<2x1x32xbf16> to vector<2x32xbf16>
    %231 = vector.shape_cast %228 : vector<2x32xbf16> to vector<2x1x32xbf16>
    tpu.vector_store %arg3[%c0_101, %c5_102, %c0_103], %231 {strides = array<i32>} : memref<2x8x32xbf16, #tpu.memory_space<vmem>>, vector<2x1x32xbf16>,
    %c0_104 = arith.constant 0 : index
    %c6 = arith.constant 6 : index
    %c0_105 = arith.constant 0 : index
    %232 = vector.load %arg1[%c0_104, %c6, %c0_105] : memref<2x8x128xf32, #tpu.memory_space<vmem>>, vector<2x1x128xf32>
    %233 = vector.shape_cast %232 : vector<2x1x128xf32> to vector<2x128xf32>
    %c0_106 = arith.constant 0 : index
    %c0_107 = arith.constant 0 : index
    %234 = vector.load %arg4[%c0_106, %c0_107] : memref<2x32xf32, #tpu.memory_space<vmem>>, vector<2x32xf32>
    %235 = arith.truncf %234 : vector<2x32xf32> to vector<2x32xbf16>
    %cst_108 = arith.constant dense<0.000000e+00> : vector<2x128xf32>
    %236 = tpu.matmul %235, %3, %cst_108 {dimension_numbers = #tpu.dot_dimension_numbers<[1], [0], [0], [1], [0, 0, 1, 1], [], []>} : vector<2x32xbf16>, vector<32x128xbf16>, vector<2x128xf32> -> vector<2x128xf32>
    %237 = arith.addf %233, %236 : vector<2x128xf32>
    %238 = vector.extract_strided_slice %237 {offsets = [0, 0], sizes = [2, 32], strides = [1, 1]} : vector<2x128xf32> to vector<2x32xf32>
    %239 = arith.negf %238 : vector<2x32xf32>
    %240 = math.exp %239 : vector<2x32xf32>
    %cst_109 = arith.constant 1.000000e+00 : f32
    %241 = vector.broadcast %cst_109 : f32 to vector<2x32xf32>
    %242 = arith.addf %241, %240 : vector<2x32xf32>
    %243 = arith.divf %241, %242 : vector<2x32xf32>
    %244 = vector.extract_strided_slice %237 {offsets = [0, 32], sizes = [2, 32], strides = [1, 1]} : vector<2x128xf32> to vector<2x32xf32>
    %245 = arith.negf %244 : vector<2x32xf32>
    %246 = math.exp %245 : vector<2x32xf32>
    %cst_110 = arith.constant 1.000000e+00 : f32
    %247 = vector.broadcast %cst_110 : f32 to vector<2x32xf32>
    %248 = arith.addf %247, %246 : vector<2x32xf32>
    %249 = arith.divf %247, %248 : vector<2x32xf32>
    %250 = vector.extract_strided_slice %237 {offsets = [0, 64], sizes = [2, 32], strides = [1, 1]} : vector<2x128xf32> to vector<2x32xf32>
    %251 = math.tanh %250 : vector<2x32xf32>
    %252 = vector.extract_strided_slice %237 {offsets = [0, 96], sizes = [2, 32], strides = [1, 1]} : vector<2x128xf32> to vector<2x32xf32>
    %253 = arith.negf %252 : vector<2x32xf32>
    %254 = math.exp %253 : vector<2x32xf32>
    %cst_111 = arith.constant 1.000000e+00 : f32
    %255 = vector.broadcast %cst_111 : f32 to vector<2x32xf32>
    %256 = arith.addf %255, %254 : vector<2x32xf32>
    %257 = arith.divf %255, %256 : vector<2x32xf32>
    %c0_112 = arith.constant 0 : index
    %c0_113 = arith.constant 0 : index
    %258 = vector.load %arg5[%c0_112, %c0_113] : memref<2x32xf32, #tpu.memory_space<vmem>>, vector<2x32xf32>
    %259 = arith.mulf %249, %258 : vector<2x32xf32>
    %260 = arith.mulf %243, %251 : vector<2x32xf32>
    %261 = arith.addf %259, %260 : vector<2x32xf32>
    %262 = math.tanh %261 : vector<2x32xf32>
    %263 = arith.mulf %257, %262 : vector<2x32xf32>
    %c0_114 = arith.constant 0 : index
    %c0_115 = arith.constant 0 : index
    %264 = vector.load %arg5[%c0_114, %c0_115] : memref<2x32xf32, #tpu.memory_space<vmem>>, vector<2x32xf32>
    tpu.vector_store %arg5[%c0_114, %c0_115], %261 {strides = array<i32>} : memref<2x32xf32, #tpu.memory_space<vmem>>, vector<2x32xf32>,
    %c0_116 = arith.constant 0 : index
    %c0_117 = arith.constant 0 : index
    %265 = vector.load %arg4[%c0_116, %c0_117] : memref<2x32xf32, #tpu.memory_space<vmem>>, vector<2x32xf32>
    tpu.vector_store %arg4[%c0_116, %c0_117], %263 {strides = array<i32>} : memref<2x32xf32, #tpu.memory_space<vmem>>, vector<2x32xf32>,
    %266 = arith.truncf %263 : vector<2x32xf32> to vector<2x32xbf16>
    %c0_118 = arith.constant 0 : index
    %c6_119 = arith.constant 6 : index
    %c0_120 = arith.constant 0 : index
    %267 = vector.load %arg3[%c0_118, %c6_119, %c0_120] : memref<2x8x32xbf16, #tpu.memory_space<vmem>>, vector<2x1x32xbf16>
    %268 = vector.shape_cast %267 : vector<2x1x32xbf16> to vector<2x32xbf16>
    %269 = vector.shape_cast %266 : vector<2x32xbf16> to vector<2x1x32xbf16>
    tpu.vector_store %arg3[%c0_118, %c6_119, %c0_120], %269 {strides = array<i32>} : memref<2x8x32xbf16, #tpu.memory_space<vmem>>, vector<2x1x32xbf16>,
    %c0_121 = arith.constant 0 : index
    %c7 = arith.constant 7 : index
    %c0_122 = arith.constant 0 : index
    %270 = vector.load %arg1[%c0_121, %c7, %c0_122] : memref<2x8x128xf32, #tpu.memory_space<vmem>>, vector<2x1x128xf32>
    %271 = vector.shape_cast %270 : vector<2x1x128xf32> to vector<2x128xf32>
    %c0_123 = arith.constant 0 : index
    %c0_124 = arith.constant 0 : index
    %272 = vector.load %arg4[%c0_123, %c0_124] : memref<2x32xf32, #tpu.memory_space<vmem>>, vector<2x32xf32>
    %273 = arith.truncf %272 : vector<2x32xf32> to vector<2x32xbf16>
    %cst_125 = arith.constant dense<0.000000e+00> : vector<2x128xf32>
    %274 = tpu.matmul %273, %3, %cst_125 {dimension_numbers = #tpu.dot_dimension_numbers<[1], [0], [0], [1], [0, 0, 1, 1], [], []>} : vector<2x32xbf16>, vector<32x128xbf16>, vector<2x128xf32> -> vector<2x128xf32>
    %275 = arith.addf %271, %274 : vector<2x128xf32>
    %276 = vector.extract_strided_slice %275 {offsets = [0, 0], sizes = [2, 32], strides = [1, 1]} : vector<2x128xf32> to vector<2x32xf32>
    %277 = arith.negf %276 : vector<2x32xf32>
    %278 = math.exp %277 : vector<2x32xf32>
    %cst_126 = arith.constant 1.000000e+00 : f32
    %279 = vector.broadcast %cst_126 : f32 to vector<2x32xf32>
    %280 = arith.addf %279, %278 : vector<2x32xf32>
    %281 = arith.divf %279, %280 : vector<2x32xf32>
    %282 = vector.extract_strided_slice %275 {offsets = [0, 32], sizes = [2, 32], strides = [1, 1]} : vector<2x128xf32> to vector<2x32xf32>
    %283 = arith.negf %282 : vector<2x32xf32>
    %284 = math.exp %283 : vector<2x32xf32>
    %cst_127 = arith.constant 1.000000e+00 : f32
    %285 = vector.broadcast %cst_127 : f32 to vector<2x32xf32>
    %286 = arith.addf %285, %284 : vector<2x32xf32>
    %287 = arith.divf %285, %286 : vector<2x32xf32>
    %288 = vector.extract_strided_slice %275 {offsets = [0, 64], sizes = [2, 32], strides = [1, 1]} : vector<2x128xf32> to vector<2x32xf32>
    %289 = math.tanh %288 : vector<2x32xf32>
    %290 = vector.extract_strided_slice %275 {offsets = [0, 96], sizes = [2, 32], strides = [1, 1]} : vector<2x128xf32> to vector<2x32xf32>
    %291 = arith.negf %290 : vector<2x32xf32>
    %292 = math.exp %291 : vector<2x32xf32>
    %cst_128 = arith.constant 1.000000e+00 : f32
    %293 = vector.broadcast %cst_128 : f32 to vector<2x32xf32>
    %294 = arith.addf %293, %292 : vector<2x32xf32>
    %295 = arith.divf %293, %294 : vector<2x32xf32>
    %c0_129 = arith.constant 0 : index
    %c0_130 = arith.constant 0 : index
    %296 = vector.load %arg5[%c0_129, %c0_130] : memref<2x32xf32, #tpu.memory_space<vmem>>, vector<2x32xf32>
    %297 = arith.mulf %287, %296 : vector<2x32xf32>
    %298 = arith.mulf %281, %289 : vector<2x32xf32>
    %299 = arith.addf %297, %298 : vector<2x32xf32>
    %300 = math.tanh %299 : vector<2x32xf32>
    %301 = arith.mulf %295, %300 : vector<2x32xf32>
    %c0_131 = arith.constant 0 : index
    %c0_132 = arith.constant 0 : index
    %302 = vector.load %arg5[%c0_131, %c0_132] : memref<2x32xf32, #tpu.memory_space<vmem>>, vector<2x32xf32>
    tpu.vector_store %arg5[%c0_131, %c0_132], %299 {strides = array<i32>} : memref<2x32xf32, #tpu.memory_space<vmem>>, vector<2x32xf32>,
    %c0_133 = arith.constant 0 : index
    %c0_134 = arith.constant 0 : index
    %303 = vector.load %arg4[%c0_133, %c0_134] : memref<2x32xf32, #tpu.memory_space<vmem>>, vector<2x32xf32>
    tpu.vector_store %arg4[%c0_133, %c0_134], %301 {strides = array<i32>} : memref<2x32xf32, #tpu.memory_space<vmem>>, vector<2x32xf32>,
    %304 = arith.truncf %301 : vector<2x32xf32> to vector<2x32xbf16>
    %c0_135 = arith.constant 0 : index
    %c7_136 = arith.constant 7 : index
    %c0_137 = arith.constant 0 : index
    %305 = vector.load %arg3[%c0_135, %c7_136, %c0_137] : memref<2x8x32xbf16, #tpu.memory_space<vmem>>, vector<2x1x32xbf16>
    %306 = vector.shape_cast %305 : vector<2x1x32xbf16> to vector<2x32xbf16>
    %307 = vector.shape_cast %304 : vector<2x32xbf16> to vector<2x1x32xbf16>
    tpu.vector_store %arg3[%c0_135, %c7_136, %c0_137], %307 {strides = array<i32>} : memref<2x8x32xbf16, #tpu.memory_space<vmem>>, vector<2x1x32xbf16>,
    return
  }
  func.func @transform_0(%arg0: i32) -> (i32, i32, i32) {
    %c0_i32 = arith.constant 0 : i32
    %c0_i32_0 = arith.constant 0 : i32
    %c0_i32_1 = arith.constant 0 : i32
    return %c0_i32, %arg0, %c0_i32_0 : i32, i32, i32
  }
  func.func @transform_1(%arg0: i32) -> (i32, i32) {
    %c0_i32 = arith.constant 0 : i32
    %c0_i32_0 = arith.constant 0 : i32
    %c0_i32_1 = arith.constant 0 : i32
    return %c0_i32, %c0_i32_0 : i32, i32
  }
  func.func @transform_2(%arg0: i32) -> (i32, i32, i32) {
    %c0_i32 = arith.constant 0 : i32
    %c0_i32_0 = arith.constant 0 : i32
    %c0_i32_1 = arith.constant 0 : i32
    return %c0_i32, %arg0, %c0_i32_0 : i32, i32, i32
  }
}

module attributes {stable_mosaic.version = 11 : i64} {
  func.func @_matmul_bias_kernel(%arg0: i32, %arg1: i32, %arg2: memref<16x32xbf16, #tpu.memory_space<vmem>>, %arg3: memref<32x128xbf16, #tpu.memory_space<vmem>>, %arg4: memref<1x128xf32, #tpu.memory_space<vmem>>, %arg5: memref<16x128xf32, #tpu.memory_space<vmem>>) attributes {dimension_semantics = [#tpu.dimension_semantics<parallel>, #tpu.dimension_semantics<parallel>], iteration_bounds = array<i64: 1, 1>, scalar_prefetch = 0 : i64, scratch_operands = 0 : i64, tpu.core_type = #tpu.core_type<tc>, window_params = [{transform_indices = @transform_0, window_bounds = array<i64: 16, 32>}, {transform_indices = @transform_1, window_bounds = array<i64: 32, 128>}, {transform_indices = @transform_2, window_bounds = array<i64: 1, 128>}, {transform_indices = @transform_3, window_bounds = array<i64: 16, 128>}]} {
    %c0 = arith.constant 0 : index
    %c0_0 = arith.constant 0 : index
    %0 = vector.load %arg2[%c0, %c0_0] : memref<16x32xbf16, #tpu.memory_space<vmem>>, vector<16x32xbf16>
    %c0_1 = arith.constant 0 : index
    %c0_2 = arith.constant 0 : index
    %1 = vector.load %arg3[%c0_1, %c0_2] : memref<32x128xbf16, #tpu.memory_space<vmem>>, vector<32x128xbf16>
    %cst = arith.constant dense<0.000000e+00> : vector<16x128xf32>
    %2 = tpu.matmul %0, %1, %cst {dimension_numbers = #tpu.dot_dimension_numbers<[1], [0], [0], [1], [0, 0, 1, 1], [], []>} : vector<16x32xbf16>, vector<32x128xbf16>, vector<16x128xf32> -> vector<16x128xf32>
    %c0_3 = arith.constant 0 : index
    %c0_4 = arith.constant 0 : index
    %3 = vector.load %arg4[%c0_3, %c0_4] : memref<1x128xf32, #tpu.memory_space<vmem>>, vector<1x128xf32>
    %4 = vector.broadcast %3 : vector<1x128xf32> to vector<16x128xf32>
    %5 = arith.addf %2, %4 : vector<16x128xf32>
    %c0_5 = arith.constant 0 : index
    %c0_6 = arith.constant 0 : index
    %6 = vector.load %arg5[%c0_5, %c0_6] : memref<16x128xf32, #tpu.memory_space<vmem>>, vector<16x128xf32>
    tpu.vector_store %arg5[%c0_5, %c0_6], %5 {strides = array<i32>} : memref<16x128xf32, #tpu.memory_space<vmem>>, vector<16x128xf32>,
    return
  }
  func.func @transform_0(%arg0: i32, %arg1: i32) -> (i32, i32) {
    %c0_i32 = arith.constant 0 : i32
    %c0_i32_0 = arith.constant 0 : i32
    return %arg0, %c0_i32 : i32, i32
  }
  func.func @transform_1(%arg0: i32, %arg1: i32) -> (i32, i32) {
    %c0_i32 = arith.constant 0 : i32
    %c0_i32_0 = arith.constant 0 : i32
    return %c0_i32, %arg1 : i32, i32
  }
  func.func @transform_2(%arg0: i32, %arg1: i32) -> (i32, i32) {
    %c0_i32 = arith.constant 0 : i32
    %c0_i32_0 = arith.constant 0 : i32
    return %c0_i32, %arg1 : i32, i32
  }
  func.func @transform_3(%arg0: i32, %arg1: i32) -> (i32, i32) {
    %c0_i32 = arith.constant 0 : i32
    return %arg0, %arg1 : i32, i32
  }
}

module attributes {stable_mosaic.version = 11 : i64} {
  func.func @_matmul_bias_kernel(%arg0: i32, %arg1: i32, %arg2: memref<16x32xbf16, #tpu.memory_space<vmem>>, %arg3: memref<32x128xbf16, #tpu.memory_space<vmem>>, %arg4: memref<1x128xf32, #tpu.memory_space<vmem>>, %arg5: memref<16x128xf32, #tpu.memory_space<vmem>>) attributes {dimension_semantics = [#tpu.dimension_semantics<parallel>, #tpu.dimension_semantics<parallel>], iteration_bounds = array<i64: 1, 1>, scalar_prefetch = 0 : i64, scratch_operands = 0 : i64, tpu.core_type = #tpu.core_type<tc>, window_params = [{transform_indices = @transform_0, window_bounds = array<i64: 16, 32>}, {transform_indices = @transform_1, window_bounds = array<i64: 32, 128>}, {transform_indices = @transform_2, window_bounds = array<i64: 1, 128>}, {transform_indices = @transform_3, window_bounds = array<i64: 16, 128>}]} {
    %c0 = arith.constant 0 : index
    %c0_0 = arith.constant 0 : index
    %0 = vector.load %arg2[%c0, %c0_0] : memref<16x32xbf16, #tpu.memory_space<vmem>>, vector<16x32xbf16>
    %c0_1 = arith.constant 0 : index
    %c0_2 = arith.constant 0 : index
    %1 = vector.load %arg3[%c0_1, %c0_2] : memref<32x128xbf16, #tpu.memory_space<vmem>>, vector<32x128xbf16>
    %cst = arith.constant dense<0.000000e+00> : vector<16x128xf32>
    %2 = tpu.matmul %0, %1, %cst {dimension_numbers = #tpu.dot_dimension_numbers<[1], [0], [0], [1], [0, 0, 1, 1], [], []>} : vector<16x32xbf16>, vector<32x128xbf16>, vector<16x128xf32> -> vector<16x128xf32>
    %c0_3 = arith.constant 0 : index
    %c0_4 = arith.constant 0 : index
    %3 = vector.load %arg4[%c0_3, %c0_4] : memref<1x128xf32, #tpu.memory_space<vmem>>, vector<1x128xf32>
    %4 = vector.broadcast %3 : vector<1x128xf32> to vector<16x128xf32>
    %5 = arith.addf %2, %4 : vector<16x128xf32>
    %c0_5 = arith.constant 0 : index
    %c0_6 = arith.constant 0 : index
    %6 = vector.load %arg5[%c0_5, %c0_6] : memref<16x128xf32, #tpu.memory_space<vmem>>, vector<16x128xf32>
    tpu.vector_store %arg5[%c0_5, %c0_6], %5 {strides = array<i32>} : memref<16x128xf32, #tpu.memory_space<vmem>>, vector<16x128xf32>,
    return
  }
  func.func @transform_0(%arg0: i32, %arg1: i32) -> (i32, i32) {
    %c0_i32 = arith.constant 0 : i32
    %c0_i32_0 = arith.constant 0 : i32
    return %arg0, %c0_i32 : i32, i32
  }
  func.func @transform_1(%arg0: i32, %arg1: i32) -> (i32, i32) {
    %c0_i32 = arith.constant 0 : i32
    %c0_i32_0 = arith.constant 0 : i32
    return %c0_i32, %arg1 : i32, i32
  }
  func.func @transform_2(%arg0: i32, %arg1: i32) -> (i32, i32) {
    %c0_i32 = arith.constant 0 : i32
    %c0_i32_0 = arith.constant 0 : i32
    return %c0_i32, %arg1 : i32, i32
  }
  func.func @transform_3(%arg0: i32, %arg1: i32) -> (i32, i32) {
    %c0_i32 = arith.constant 0 : i32
    return %arg0, %arg1 : i32, i32
  }
}

</mosaic_0001>

<llo_original>
// kernel: decoder_lstm_forward.3
$region0: #{decoder_lstm_forward.3}
  #allocation0 [shape = 'u32[]', space=smem, size = 0x4, offset = 0x4, fixed_abs, tag = 'smem constant byte address 0x4 - core index']
  #allocation1 [shape = 'u32[144,128]{1,0:T(1,128)}', space=vmem, size = 0x12000, scoped, tag = 'internal scratch']
  %s0 = inlined_call_operand.vmem [shape: bf16[16,32], index: 0, kind: input, shape index: {}]
  %s1 = inlined_call_operand.vmem [shape: bf16[32,128], index: 1, kind: input, shape index: {}]
  %s2 = inlined_call_operand.vmem [shape: f32[1,128], index: 2, kind: input, shape index: {}]
  %s3 = inlined_call_operand.vmem [shape: f32[16,128], index: 3, kind: output, shape index: {}]
  %s4 = sld [smem:[#allocation0]]
  $region22: #{decoder_lstm_forward.3} parent=0
    _
  %s6 = ssub.s32 1, %s4
  %s7 = scalar_select 0, %s6, %s4
  // Predicated region
  $region2: #{decoder_lstm_forward.3} parent=0 // pred_check
    _
  $region3: #{decoder_lstm_forward.3} parent=0 // pred_check_branch
    %9 = sbr.rel (0) target = $region5
  $region4: #{decoder_lstm_forward.3} parent=0 // pred_region
    _
  $region5: #{decoder_lstm_forward.3} parent=0 // pred_fallthru
    _
  // Predicated region
  $region6: #{decoder_lstm_forward.3} parent=0 // pred_check
    _
  $region7: #{decoder_lstm_forward.3} parent=0 // pred_check_branch
    %11 = sbr.rel (0) target = $region9
  $region8: #{decoder_lstm_forward.3} parent=0 // pred_region
    _
  $region9: #{decoder_lstm_forward.3} parent=0 // pred_fallthru
    _
  // Predicated region
  $region10: #{decoder_lstm_forward.3} parent=0 // pred_check
    _
  $region11: #{decoder_lstm_forward.3} parent=0 // pred_check_branch
    %13 = sbr.rel (0) target = $region13
  $region12: #{decoder_lstm_forward.3} parent=0 // pred_region
    _
  $region13: #{decoder_lstm_forward.3} parent=0 // pred_fallthru
    _
  %v15 = vld [vmem:[%s0] sm:$0xf]
  %v16 = vld [vmem:[%s0 + $0x4] sm:$0xf]
  %v17 = vld [vmem:[%s1] sm:$0xf]
  %v18 = vld [vmem:[%s1 + $0x4] sm:$0xf]
  %v19 = vld [vmem:[%s1 + $0x8] sm:$0xf]
  %v20 = vld [vmem:[%s1 + $0xc] sm:$0xf]
  %v21 = vld [vmem:[%s2] sm:$0x1]
  %v23 = vlaneseq
  %v24 = vshrl.u32 %v23, 7
  %v25 = vsub.s32 0, %v24
  %v26 = vrot.slane %v21, %v25
  %v30 = vunpack.c.l.b16 %v15
  %v31 = vunpack.c.l.b16 %v16
  %v32 = vpack.c.b16 %v31, %v30
  %v37 = vunpack.c.l.b16 %v17
  %v38 = vunpack.c.l.b16 %v18
  %v39 = vunpack.c.l.b16 %v19
  %v40 = vunpack.c.l.b16 %v20
  %v41 = vpack.c.b16 %v38, %v37
  %v42 = vpack.c.b16 %v40, %v39
  %vm45 = vcmask 261120
  %v47 = vsel %vm45, %v32, 0
  %49 = vmatprep.subr.bf16.mxu0 0
  %50 = vmatpush1.bf16.msra.mxu0 %v41
  %51 = vmatprep.subr.bf16.mxu0 0
  %52 = vmatpush1.bf16.msra.mxu0 %v42
  %53 = vmatprep.subr.bf16.mxu0 0
  %54 = vmatpush1.bf16.msra.mxu0 0
  %55 = vmatprep.subr.bf16.mxu0 0
  %56 = vmatpush1.bf16.msra.mxu0 0
  %57 = vmatprep.subr.bf16.mxu0 0
  %58 = vmatpush1.bf16.msra.mxu0 0
  %59 = vmatprep.subr.bf16.mxu0 0
  %60 = vmatpush1.bf16.msra.mxu0 0
  %61 = vmatprep.subr.bf16.mxu0 0
  %62 = vmatpush1.bf16.msra.mxu0 0
  %63 = vmatprep.subr.bf16.mxu0 0
  %64 = vmatpush1.bf16.msra.mxu0 0
  %65 = vmatprep.subr.bf16.mxu0 0
  %66 = vmatpush1.bf16.msra.mxu0 0
  %67 = vmatprep.subr.bf16.mxu0 0
  %68 = vmatpush1.bf16.msra.mxu0 0
  %69 = vmatprep.subr.bf16.mxu0 0
  %70 = vmatpush1.bf16.msra.mxu0 0
  %71 = vmatprep.subr.bf16.mxu0 0
  %72 = vmatpush1.bf16.msra.mxu0 0
  %73 = vmatprep.subr.bf16.mxu0 0
  %74 = vmatpush1.bf16.msra.mxu0 0
  %75 = vmatprep.subr.bf16.mxu0 0
  %76 = vmatpush1.bf16.msra.mxu0 0
  %77 = vmatprep.subr.bf16.mxu0 0
  %78 = vmatpush1.bf16.msra.mxu0 0
  %79 = vmatprep.subr.bf16.mxu0 0
  %80 = vmatpush1.bf16.msra.mxu0 0
  %81 = vmatprep.mubr.bf16.mxu0 0
  %82 = vmatmul.mubr.bf16.gmra.mrb[0].mxu0 %v47
  %v83 = vpop.f32.mrb[0].mxu0
  %v84 = vadd.f32 %v26, %v83
  %v85 = vpop.f32.mrb[0].mxu0
  %v86 = vpop.f32.mrb[0].mxu0
  %v87 = vadd.f32 %v26, %v86
  %v88 = vpop.f32.mrb[0].mxu0
  %89 = vdwg.mxu0
  %90 = vst [vmem:[%s3] sm:$0xff] %v84
  %91 = vst [vmem:[%s3 + $0x8] sm:$0xff] %v87
  // Predicated region
  $region14: #{decoder_lstm_forward.3} parent=0 // pred_check
    _
  $region15: #{decoder_lstm_forward.3} parent=0 // pred_check_branch
    %93 = sbr.rel (0) target = $region17
  $region16: #{decoder_lstm_forward.3} parent=0 // pred_region
    _
  $region17: #{decoder_lstm_forward.3} parent=0 // pred_fallthru
    _
  // Predicated region
  $region18: #{decoder_lstm_forward.3} parent=0 // pred_check
    _
  $region19: #{decoder_lstm_forward.3} parent=0 // pred_check_branch
    %95 = sbr.rel (0) target = $region21
  $region20: #{decoder_lstm_forward.3} parent=0 // pred_region
    _
  $region21: #{decoder_lstm_forward.3} parent=0 // pred_fallthru
    _

// kernel: decoder_lstm_forward.5
$region0: #{decoder_lstm_forward.5}
  #allocation0 [shape = 'u32[]', space=smem, size = 0x4, offset = 0x4, fixed_abs, tag = 'smem constant byte address 0x4 - core index']
  #allocation1 [shape = 'u32[144,128]{1,0:T(1,128)}', space=vmem, size = 0x12000, scoped, tag = 'internal scratch']
  %s0 = inlined_call_operand.vmem [shape: bf16[16,32], index: 0, kind: input, shape index: {}]
  %s1 = inlined_call_operand.vmem [shape: bf16[32,128], index: 1, kind: input, shape index: {}]
  %s2 = inlined_call_operand.vmem [shape: f32[1,128], index: 2, kind: input, shape index: {}]
  %s3 = inlined_call_operand.hbm [shape: f32[16,128], index: 3, kind: output, shape index: {}]
  %s4 = sld [smem:[#allocation0]]
  $region22: #{decoder_lstm_forward.5} parent=0
    _
  %s6 = ssub.s32 1, %s4
  %s7 = scalar_select 0, %s6, %s4
  $region1: #{decoder_lstm_forward.5} parent=0
    #allocation2 [shape = 'u8[8192]{0}', space=vmem, size = 0x2000, scoped, tag = 'output window, operand 0, single buffered']
    #allocation3 [shape = 's32[1]{0}', space=sflag, size = 0x4, scoped, tag = 'scoped memory for decoder_lstm_forward.5']
    %8 = vsyncpa [#allocation3], 0
    // Predicated region
    $region2: #{decoder_lstm_forward.5} parent=1 // pred_check
      _
    $region3: #{decoder_lstm_forward.5} parent=1 // pred_check_branch
      %10 = sbr.rel (0) target = $region5
    $region4: #{decoder_lstm_forward.5} parent=1 // pred_region
      _
    $region5: #{decoder_lstm_forward.5} parent=1 // pred_fallthru
      _
    // Predicated region
    $region6: #{decoder_lstm_forward.5} parent=1 // pred_check
      _
    $region7: #{decoder_lstm_forward.5} parent=1 // pred_check_branch
      %12 = sbr.rel (0) target = $region9
    $region8: #{decoder_lstm_forward.5} parent=1 // pred_region
      _
    $region9: #{decoder_lstm_forward.5} parent=1 // pred_fallthru
      _
    // Predicated region
    $region10: #{decoder_lstm_forward.5} parent=1 // pred_check
      _
    $region11: #{decoder_lstm_forward.5} parent=1 // pred_check_branch
      %14 = sbr.rel (0) target = $region13
    $region12: #{decoder_lstm_forward.5} parent=1 // pred_region
      _
    $region13: #{decoder_lstm_forward.5} parent=1 // pred_fallthru
      _
    %v16 = vld [vmem:[%s0] sm:$0xf]
    %v17 = vld [vmem:[%s0 + $0x4] sm:$0xf]
    %v18 = vld [vmem:[%s1] sm:$0xf]
    %v19 = vld [vmem:[%s1 + $0x4] sm:$0xf]
    %v20 = vld [vmem:[%s1 + $0x8] sm:$0xf]
    %v21 = vld [vmem:[%s1 + $0xc] sm:$0xf]
    %v22 = vld [vmem:[%s2] sm:$0x1]
    %v24 = vlaneseq
    %v25 = vshrl.u32 %v24, 7
    %v26 = vsub.s32 0, %v25
    %v27 = vrot.slane %v22, %v26
    %v31 = vunpack.c.l.b16 %v16
    %v32 = vunpack.c.l.b16 %v17
    %v33 = vpack.c.b16 %v32, %v31
    %v38 = vunpack.c.l.b16 %v18
    %v39 = vunpack.c.l.b16 %v19
    %v40 = vunpack.c.l.b16 %v20
    %v41 = vunpack.c.l.b16 %v21
    %v42 = vpack.c.b16 %v39, %v38
    %v43 = vpack.c.b16 %v41, %v40
    %vm46 = vcmask 261120
    %v48 = vsel %vm46, %v33, 0
    %50 = vmatprep.subr.bf16.mxu0 0
    %51 = vmatpush1.bf16.msra.mxu0 %v42
    %52 = vmatprep.subr.bf16.mxu0 0
    %53 = vmatpush1.bf16.msra.mxu0 %v43
    %54 = vmatprep.subr.bf16.mxu0 0
    %55 = vmatpush1.bf16.msra.mxu0 0
    %56 = vmatprep.subr.bf16.mxu0 0
    %57 = vmatpush1.bf16.msra.mxu0 0
    %58 = vmatprep.subr.bf16.mxu0 0
    %59 = vmatpush1.bf16.msra.mxu0 0
    %60 = vmatprep.subr.bf16.mxu0 0
    %61 = vmatpush1.bf16.msra.mxu0 0
    %62 = vmatprep.subr.bf16.mxu0 0
    %63 = vmatpush1.bf16.msra.mxu0 0
    %64 = vmatprep.subr.bf16.mxu0 0
    %65 = vmatpush1.bf16.msra.mxu0 0
    %66 = vmatprep.subr.bf16.mxu0 0
    %67 = vmatpush1.bf16.msra.mxu0 0
    %68 = vmatprep.subr.bf16.mxu0 0
    %69 = vmatpush1.bf16.msra.mxu0 0
    %70 = vmatprep.subr.bf16.mxu0 0
    %71 = vmatpush1.bf16.msra.mxu0 0
    %72 = vmatprep.subr.bf16.mxu0 0
    %73 = vmatpush1.bf16.msra.mxu0 0
    %74 = vmatprep.subr.bf16.mxu0 0
    %75 = vmatpush1.bf16.msra.mxu0 0
    %76 = vmatprep.subr.bf16.mxu0 0
    %77 = vmatpush1.bf16.msra.mxu0 0
    %78 = vmatprep.subr.bf16.mxu0 0
    %79 = vmatpush1.bf16.msra.mxu0 0
    %80 = vmatprep.subr.bf16.mxu0 0
    %81 = vmatpush1.bf16.msra.mxu0 0
    %82 = vmatprep.mubr.bf16.mxu0 0
    %83 = vmatmul.mubr.bf16.gmra.mrb[0].mxu0 %v48
    %v84 = vpop.f32.mrb[0].mxu0
    %v85 = vadd.f32 %v27, %v84
    %v86 = vpop.f32.mrb[0].mxu0
    %v87 = vpop.f32.mrb[0].mxu0
    %v88 = vadd.f32 %v27, %v87
    %v89 = vpop.f32.mrb[0].mxu0
    %90 = vdwg.mxu0
    %91 = vst [vmem:[#allocation2] sm:$0xff] %v85
    %92 = vst [vmem:[#allocation2 + $0x8] sm:$0xff] %v88
    // Predicated region
    $region14: #{decoder_lstm_forward.5} parent=1 // pred_check
      _
    $region15: #{decoder_lstm_forward.5} parent=1 // pred_check_branch
      %94 = sbr.rel (0) target = $region17
    $region16: #{decoder_lstm_forward.5} parent=1 // pred_region
      %s96 = ssub.s32 256, 256
      %97 = vsyncadd [#allocation3], %s96
      %s98 = sshll.u32 [#allocation2], 4
      %s99 = int_to_ptr.vmem [resolvable:$true] %s98
      %104 = dma.vmem_to_hbm [thread:$0]  %s99, 256, %s3, [#allocation3], 128, 128, 8
    $region17: #{decoder_lstm_forward.5} parent=1 // pred_fallthru
      _
    // Predicated region
    $region18: #{decoder_lstm_forward.5} parent=1 // pred_check
      _
    $region19: #{decoder_lstm_forward.5} parent=1 // pred_check_branch
      %106 = sbr.rel (0) target = $region21
    $region20: #{decoder_lstm_forward.5} parent=1 // pred_region
      %107 = dma.done [#allocation3], 256
    $region21: #{decoder_lstm_forward.5} parent=1 // pred_fallthru
      _
    %108 = vsyncpa [#allocation3], 1

// kernel: decoder_lstm_forward.4
$region0: #{decoder_lstm_forward.4}
  #allocation0 [shape = 'u32[]', space=smem, size = 0x4, offset = 0x4, fixed_abs, tag = 'smem constant byte address 0x4 - core index']
  #allocation1 [shape = 'u32[144,128]{1,0:T(1,128)}', space=vmem, size = 0x12000, scoped, tag = 'internal scratch']
  #allocation2 [shape = 'f32[2,32]{1,0:T(2,128)}', space=vmem, size = 0x400, scoped, tag = 'scratch operand']
  #allocation3 [shape = 'f32[2,32]{1,0:T(2,128)}', space=vmem, size = 0x400, scoped, tag = 'scratch operand']
  %s0 = inlined_call_operand.vmem [shape: f32[2,8,128], index: 0, kind: input, shape index: {}]
  %s1 = inlined_call_operand.vmem [shape: bf16[32,128], index: 1, kind: input, shape index: {}]
  %s2 = inlined_call_operand.vmem [shape: bf16[2,8,32], index: 2, kind: output, shape index: {}]
  %s3 = sld [smem:[#allocation0]]
  $region22: #{decoder_lstm_forward.4} parent=0
    _
  %s5 = ssub.s32 1, %s3
  %s6 = scalar_select 0, %s5, %s3
  // Predicated region
  $region2: #{decoder_lstm_forward.4} parent=0 // pred_check
    _
  $region3: #{decoder_lstm_forward.4} parent=0 // pred_check_branch
    %8 = sbr.rel (0) target = $region5
  $region4: #{decoder_lstm_forward.4} parent=0 // pred_region
    _
  $region5: #{decoder_lstm_forward.4} parent=0 // pred_fallthru
    _
  // Predicated region
  $region6: #{decoder_lstm_forward.4} parent=0 // pred_check
    _
  $region7: #{decoder_lstm_forward.4} parent=0 // pred_check_branch
    %10 = sbr.rel (0) target = $region9
  $region8: #{decoder_lstm_forward.4} parent=0 // pred_region
    _
  $region9: #{decoder_lstm_forward.4} parent=0 // pred_fallthru
    _
  %p12 = scmp.eq.s32.totalorder 0, 0
  // Predicated region
  $region10: #{decoder_lstm_forward.4} parent=0 // pred_check
    %p13 = pneg %p12
  $region11: #{decoder_lstm_forward.4} parent=0 // pred_check_branch
    %15 = sbr.rel (%p13) target = $region13
  $region12: #{decoder_lstm_forward.4} parent=0 // pred_region
    %vm16 = vcmask 254976
    %17 = vst.msk [vmem:[#allocation2] sm:$0x3] %vm16, 0.0
    %18 = vst.msk [vmem:[#allocation3] sm:$0x3] %vm16, 0.0
  $region13: #{decoder_lstm_forward.4} parent=0 // pred_fallthru
    _
  %v19 = vld [vmem:[%s1] sm:$0xf]
  %v20 = vld [vmem:[%s1 + $0x4] sm:$0xf]
  %v21 = vld [vmem:[%s1 + $0x8] sm:$0xf]
  %v22 = vld [vmem:[%s1 + $0xc] sm:$0xf]
  %v23 = vld [vmem:[%s0] sm:$0x1]
  %v24 = vld [vmem:[%s0 + $0x8] sm:$0x1]
  %v25 = vld [vmem:[#allocation2] sm:$0x3]
  %v26 = vpack.c.bf16 %v25, %v25
  %v31 = vunpack.c.l.b16 %v19
  %v32 = vunpack.c.l.b16 %v20
  %v33 = vunpack.c.l.b16 %v21
  %v34 = vunpack.c.l.b16 %v22
  %v35 = vpack.c.b16 %v32, %v31
  %v36 = vpack.c.b16 %v34, %v33
  %vm39 = vcmask 261120
  %v41 = vsel %vm39, %v26, 0
  %43 = vmatprep.subr.bf16.mxu0 0
  %44 = vmatpush1.bf16.msra.mxu0 %v35
  %45 = vmatprep.subr.bf16.mxu0 0
  %46 = vmatpush1.bf16.msra.mxu0 %v36
  %47 = vmatprep.subr.bf16.mxu0 0
  %48 = vmatpush1.bf16.msra.mxu0 0
  %49 = vmatprep.subr.bf16.mxu0 0
  %50 = vmatpush1.bf16.msra.mxu0 0
  %51 = vmatprep.subr.bf16.mxu0 0
  %52 = vmatpush1.bf16.msra.mxu0 0
  %53 = vmatprep.subr.bf16.mxu0 0
  %54 = vmatpush1.bf16.msra.mxu0 0
  %55 = vmatprep.subr.bf16.mxu0 0
  %56 = vmatpush1.bf16.msra.mxu0 0
  %57 = vmatprep.subr.bf16.mxu0 0
  %58 = vmatpush1.bf16.msra.mxu0 0
  %59 = vmatprep.subr.bf16.mxu0 0
  %60 = vmatpush1.bf16.msra.mxu0 0
  %61 = vmatprep.subr.bf16.mxu0 0
  %62 = vmatpush1.bf16.msra.mxu0 0
  %63 = vmatprep.subr.bf16.mxu0 0
  %64 = vmatpush1.bf16.msra.mxu0 0
  %65 = vmatprep.subr.bf16.mxu0 0
  %66 = vmatpush1.bf16.msra.mxu0 0
  %67 = vmatprep.subr.bf16.mxu0 0
  %68 = vmatpush1.bf16.msra.mxu0 0
  %69 = vmatprep.subr.bf16.mxu0 0
  %70 = vmatpush1.bf16.msra.mxu0 0
  %71 = vmatprep.subr.bf16.mxu0 0
  %72 = vmatpush1.bf16.msra.mxu0 0
  %73 = vmatprep.subr.bf16.mxu0 0
  %74 = vmatpush1.bf16.msra.mxu0 0
  %75 = vmatprep.mubr.bf16.mxu0 0
  %76 = vmatmul.mubr.bf16.gmra.mrb[0].mxu0 %v41
  %v77 = vpop.f32.mrb[0].mxu0
  %v78 = vadd.f32 0.0, %v77
  %v79 = vpop.f32.mrb[0].mxu0
  %v80 = vpop.f32.mrb[0].mxu0
  %v81 = vpop.f32.mrb[0].mxu0
  %82 = vdwg.mxu0
  %v84 = vrot.slane %v78, 1
  %v87 = vadd.f32 %v23, %v78
  %v88 = vadd.f32 %v24, %v84
  %v89 = vxor.u32 %v87, 2147483648
  %v90 = vxor.u32 %v88, 2147483648
  %v91 = vmul.f32 %v89, 1.442695
  %v92 = vpow.pop %v91
  %v93 = vmul.f32 %v90, 1.442695
  %v94 = vpow.pop %v93
  %v95 = vadd.f32 %v92, 1.0
  %v96 = vadd.f32 %v94, 1.0
  %v97 = vrcp.pop %v95
  %v98 = vmul.f32 1.0, %v97
  %v99 = vrcp.pop %v96
  %v100 = vmul.f32 1.0, %v99
  %v101 = vtanh.pop %v87
  %v102 = vtanh.pop %v88
  %v103 = vld [vmem:[#allocation3] sm:$0x3]
  %v105 = vrot.slane %v103, 1
  %106 = vrot.lane.b32.xlu0 %v103, 32
  %v107 = vpop.permute.xlu0 %106
  %108 = vrot.lane.b32.xlu0 %v105, 32
  %v109 = vpop.permute.xlu0 %108
  %v112 = vmul.f32 %v98, %v107
  %v113 = vmul.f32 %v100, %v109
  %116 = vrot.lane.b32.xlu0 %v101, 64
  %v117 = vpop.permute.xlu0 %116
  %118 = vrot.lane.b32.xlu0 %v102, 64
  %v119 = vpop.permute.xlu0 %118
  %v122 = vmul.f32 %v98, %v117
  %v123 = vmul.f32 %v100, %v119
  %126 = vrot.lane.b32.xlu0 %v122, 32
  %v127 = vpop.permute.xlu0 %126
  %128 = vrot.lane.b32.xlu0 %v123, 32
  %v129 = vpop.permute.xlu0 %128
  %v132 = vadd.f32 %v112, %v127
  %v133 = vadd.f32 %v113, %v129
  %v134 = vtanh.pop %v132
  %v135 = vtanh.pop %v133
  %138 = vrot.lane.b32.xlu0 %v134, 64
  %v139 = vpop.permute.xlu0 %138
  %140 = vrot.lane.b32.xlu0 %v135, 64
  %v141 = vpop.permute.xlu0 %140
  %v144 = vmul.f32 %v98, %v139
  %v145 = vmul.f32 %v100, %v141
  %v148 = vrot.slane %v133, 7
  %vm149 = vcmask 1041409
  %v150 = vsel %vm149, %v148, %v132
  %151 = vrot.lane.b32.xlu0 %v150, 96
  %v152 = vpop.permute.xlu0 %151
  %vm154 = vcmask 254976
  %155 = vst.msk [vmem:[#allocation3] sm:$0x3] %vm154, %v152
  %v158 = vrot.slane %v145, 7
  %v159 = vsel %vm149, %v158, %v144
  %160 = vrot.lane.b32.xlu0 %v159, 32
  %v161 = vpop.permute.xlu0 %160
  %163 = vst.msk [vmem:[#allocation2] sm:$0x3] %vm154, %v161
  %v164 = vpack.c.bf16 %v144, %v144
  %v165 = vpack.c.bf16 %v145, %v145
  %v168 = vunpack.c.l.b16 %v164
  %v169 = vunpack.c.l.b16 %v165
  %v170 = vpack.c.b16 %v168, %v168
  %v171 = vpack.c.b16 %v169, %v169
  %172 = vrot.lane.b32.xlu0 %v170, 32
  %v173 = vpop.permute.xlu0 %172
  %174 = vrot.lane.b32.xlu0 %v171, 32
  %v175 = vpop.permute.xlu0 %174
  %vm178 = vcmask 253952
  %vm179 = vsmask.f32 256
  %vm180 = vmand %vm178, %vm179
  %v181 = vld [vmem:[%s2] sm:$0x1]
  %v182 = vsel %vm180, %v173, %v181
  %183 = vst [vmem:[%s2] sm:$0x1] %v182
  %v184 = vld [vmem:[%s2 + $0x4] sm:$0x1]
  %v185 = vsel %vm180, %v175, %v184
  %186 = vst [vmem:[%s2 + $0x4] sm:$0x1] %v185
  %v187 = vld [vmem:[%s0 + $0x1] sm:$0x1]
  %v188 = vld [vmem:[%s0 + $0x9] sm:$0x1]
  %v189 = vld [vmem:[#allocation2] sm:$0x3]
  %v190 = vpack.c.bf16 %v189, %v189
  %v192 = vsel %vm39, %v190, 0
  %194 = vmatprep.subr.bf16.mxu0 0
  %195 = vmatpush1.bf16.msra.mxu0 %v35
  %196 = vmatprep.subr.bf16.mxu0 0
  %197 = vmatpush1.bf16.msra.mxu0 %v36
  %198 = vmatprep.subr.bf16.mxu0 0
  %199 = vmatpush1.bf16.msra.mxu0 0
  %200 = vmatprep.subr.bf16.mxu0 0
  %201 = vmatpush1.bf16.msra.mxu0 0
  %202 = vmatprep.subr.bf16.mxu0 0
  %203 = vmatpush1.bf16.msra.mxu0 0
  %204 = vmatprep.subr.bf16.mxu0 0
  %205 = vmatpush1.bf16.msra.mxu0 0
  %206 = vmatprep.subr.bf16.mxu0 0
  %207 = vmatpush1.bf16.msra.mxu0 0
  %208 = vmatprep.subr.bf16.mxu0 0
  %209 = vmatpush1.bf16.msra.mxu0 0
  %210 = vmatprep.subr.bf16.mxu0 0
  %211 = vmatpush1.bf16.msra.mxu0 0
  %212 = vmatprep.subr.bf16.mxu0 0
  %213 = vmatpush1.bf16.msra.mxu0 0
  %214 = vmatprep.subr.bf16.mxu0 0
  %215 = vmatpush1.bf16.msra.mxu0 0
  %216 = vmatprep.subr.bf16.mxu0 0
  %217 = vmatpush1.bf16.msra.mxu0 0
  %218 = vmatprep.subr.bf16.mxu0 0
  %219 = vmatpush1.bf16.msra.mxu0 0
  %220 = vmatprep.subr.bf16.mxu0 0
  %221 = vmatpush1.bf16.msra.mxu0 0
  %222 = vmatprep.subr.bf16.mxu0 0
  %223 = vmatpush1.bf16.msra.mxu0 0
  %224 = vmatprep.subr.bf16.mxu0 0
  %225 = vmatpush1.bf16.msra.mxu0 0
  %226 = vmatprep.mubr.bf16.mxu0 0
  %227 = vmatmul.mubr.bf16.gmra.mrb[0].mxu0 %v192
  %v228 = vpop.f32.mrb[0].mxu0
  %v229 = vadd.f32 0.0, %v228
  %v230 = vpop.f32.mrb[0].mxu0
  %v231 = vpop.f32.mrb[0].mxu0
  %v232 = vpop.f32.mrb[0].mxu0
  %233 = vdwg.mxu0
  %v235 = vrot.slane %v229, 1
  %v238 = vadd.f32 %v187, %v229
  %v239 = vadd.f32 %v188, %v235
  %v240 = vxor.u32 %v238, 2147483648
  %v241 = vxor.u32 %v239, 2147483648
  %v242 = vmul.f32 %v240, 1.442695
  %v243 = vpow.pop %v242
  %v244 = vmul.f32 %v241, 1.442695
  %v245 = vpow.pop %v244
  %v246 = vadd.f32 %v243, 1.0
  %v247 = vadd.f32 %v245, 1.0
  %v248 = vrcp.pop %v246
  %v249 = vmul.f32 1.0, %v248
  %v250 = vrcp.pop %v247
  %v251 = vmul.f32 1.0, %v250
  %v252 = vtanh.pop %v238
  %v253 = vtanh.pop %v239
  %v254 = vld [vmem:[#allocation3] sm:$0x3]
  %v256 = vrot.slane %v254, 1
  %257 = vrot.lane.b32.xlu0 %v254, 32
  %v258 = vpop.permute.xlu0 %257
  %259 = vrot.lane.b32.xlu0 %v256, 32
  %v260 = vpop.permute.xlu0 %259
  %v263 = vmul.f32 %v249, %v258
  %v264 = vmul.f32 %v251, %v260
  %267 = vrot.lane.b32.xlu0 %v252, 64
  %v268 = vpop.permute.xlu0 %267
  %269 = vrot.lane.b32.xlu0 %v253, 64
  %v270 = vpop.permute.xlu0 %269
  %v273 = vmul.f32 %v249, %v268
  %v274 = vmul.f32 %v251, %v270
  %277 = vrot.lane.b32.xlu0 %v273, 32
  %v278 = vpop.permute.xlu0 %277
  %279 = vrot.lane.b32.xlu0 %v274, 32
  %v280 = vpop.permute.xlu0 %279
  %v283 = vadd.f32 %v263, %v278
  %v284 = vadd.f32 %v264, %v280
  %v285 = vtanh.pop %v283
  %v286 = vtanh.pop %v284
  %289 = vrot.lane.b32.xlu0 %v285, 64
  %v290 = vpop.permute.xlu0 %289
  %291 = vrot.lane.b32.xlu0 %v286, 64
  %v292 = vpop.permute.xlu0 %291
  %v295 = vmul.f32 %v249, %v290
  %v296 = vmul.f32 %v251, %v292
  %v299 = vrot.slane %v284, 7
  %v300 = vsel %vm149, %v299, %v283
  %301 = vrot.lane.b32.xlu0 %v300, 96
  %v302 = vpop.permute.xlu0 %301
  %304 = vst.msk [vmem:[#allocation3] sm:$0x3] %vm154, %v302
  %v307 = vrot.slane %v296, 7
  %v308 = vsel %vm149, %v307, %v295
  %309 = vrot.lane.b32.xlu0 %v308, 32
  %v310 = vpop.permute.xlu0 %309
  %312 = vst.msk [vmem:[#allocation2] sm:$0x3] %vm154, %v310
  %v313 = vpack.c.bf16 %v295, %v295
  %v314 = vpack.c.bf16 %v296, %v296
  %v317 = vunpack.c.l.b16 %v313
  %v318 = vunpack.c.l.b16 %v314
  %v319 = vpack.c.b16 %v317, %v317
  %v320 = vpack.c.b16 %v318, %v318
  %v322 = vshll.u32 %v319, 16
  %v325 = vshll.u32 %v320, 16
  %327 = vrot.lane.b32.xlu0 %v322, 32
  %v328 = vpop.permute.xlu0 %327
  %329 = vrot.lane.b32.xlu0 %v325, 32
  %v330 = vpop.permute.xlu0 %329
  %vm333 = vsmask.f32 7938
  %vm334 = vmand %vm178, %vm333
  %v335 = vld [vmem:[%s2] sm:$0x1]
  %v336 = vsel %vm334, %v328, %v335
  %337 = vst [vmem:[%s2] sm:$0x1] %v336
  %v338 = vld [vmem:[%s2 + $0x4] sm:$0x1]
  %v339 = vsel %vm334, %v330, %v338
  %340 = vst [vmem:[%s2 + $0x4] sm:$0x1] %v339
  %v341 = vld [vmem:[%s0 + $0x2] sm:$0x1]
  %v342 = vld [vmem:[%s0 + $0xa] sm:$0x1]
  %v343 = vld [vmem:[#allocation2] sm:$0x3]
  %v344 = vpack.c.bf16 %v343, %v343
  %v346 = vsel %vm39, %v344, 0
  %348 = vmatprep.subr.bf16.mxu0 0
  %349 = vmatpush1.bf16.msra.mxu0 %v35
  %350 = vmatprep.subr.bf16.mxu0 0
  %351 = vmatpush1.bf16.msra.mxu0 %v36
  %352 = vmatprep.subr.bf16.mxu0 0
  %353 = vmatpush1.bf16.msra.mxu0 0
  %354 = vmatprep.subr.bf16.mxu0 0
  %355 = vmatpush1.bf16.msra.mxu0 0
  %356 = vmatprep.subr.bf16.mxu0 0
  %357 = vmatpush1.bf16.msra.mxu0 0
  %358 = vmatprep.subr.bf16.mxu0 0
  %359 = vmatpush1.bf16.msra.mxu0 0
  %360 = vmatprep.subr.bf16.mxu0 0
  %361 = vmatpush1.bf16.msra.mxu0 0
  %362 = vmatprep.subr.bf16.mxu0 0
  %363 = vmatpush1.bf16.msra.mxu0 0
  %364 = vmatprep.subr.bf16.mxu0 0
  %365 = vmatpush1.bf16.msra.mxu0 0
  %366 = vmatprep.subr.bf16.mxu0 0
  %367 = vmatpush1.bf16.msra.mxu0 0
  %368 = vmatprep.subr.bf16.mxu0 0
  %369 = vmatpush1.bf16.msra.mxu0 0
  %370 = vmatprep.subr.bf16.mxu0 0
  %371 = vmatpush1.bf16.msra.mxu0 0
  %372 = vmatprep.subr.bf16.mxu0 0
  %373 = vmatpush1.bf16.msra.mxu0 0
  %374 = vmatprep.subr.bf16.mxu0 0
  %375 = vmatpush1.bf16.msra.mxu0 0
  %376 = vmatprep.subr.bf16.mxu0 0
  %377 = vmatpush1.bf16.msra.mxu0 0
  %378 = vmatprep.subr.bf16.mxu0 0
  %379 = vmatpush1.bf16.msra.mxu0 0
  %380 = vmatprep.mubr.bf16.mxu0 0
  %381 = vmatmul.mubr.bf16.gmra.mrb[0].mxu0 %v346
  %v382 = vpop.f32.mrb[0].mxu0
  %v383 = vadd.f32 0.0, %v382
  %v384 = vpop.f32.mrb[0].mxu0
  %v385 = vpop.f32.mrb[0].mxu0
  %v386 = vpop.f32.mrb[0].mxu0
  %387 = vdwg.mxu0
  %v389 = vrot.slane %v383, 1
  %v392 = vadd.f32 %v341, %v383
  %v393 = vadd.f32 %v342, %v389
  %v394 = vxor.u32 %v392, 2147483648
  %v395 = vxor.u32 %v393, 2147483648
  %v396 = vmul.f32 %v394, 1.442695
  %v397 = vpow.pop %v396
  %v398 = vmul.f32 %v395, 1.442695
  %v399 = vpow.pop %v398
  %v400 = vadd.f32 %v397, 1.0
  %v401 = vadd.f32 %v399, 1.0
  %v402 = vrcp.pop %v400
  %v403 = vmul.f32 1.0, %v402
  %v404 = vrcp.pop %v401
  %v405 = vmul.f32 1.0, %v404
  %v406 = vtanh.pop %v392
  %v407 = vtanh.pop %v393
  %v408 = vld [vmem:[#allocation3] sm:$0x3]
  %v410 = vrot.slane %v408, 1
  %411 = vrot.lane.b32.xlu0 %v408, 32
  %v412 = vpop.permute.xlu0 %411
  %413 = vrot.lane.b32.xlu0 %v410, 32
  %v414 = vpop.permute.xlu0 %413
  %v417 = vmul.f32 %v403, %v412
  %v418 = vmul.f32 %v405, %v414
  %421 = vrot.lane.b32.xlu0 %v406, 64
  %v422 = vpop.permute.xlu0 %421
  %423 = vrot.lane.b32.xlu0 %v407, 64
  %v424 = vpop.permute.xlu0 %423
  %v427 = vmul.f32 %v403, %v422
  %v428 = vmul.f32 %v405, %v424
  %431 = vrot.lane.b32.xlu0 %v427, 32
  %v432 = vpop.permute.xlu0 %431
  %433 = vrot.lane.b32.xlu0 %v428, 32
  %v434 = vpop.permute.xlu0 %433
  %v437 = vadd.f32 %v417, %v432
  %v438 = vadd.f32 %v418, %v434
  %v439 = vtanh.pop %v437
  %v440 = vtanh.pop %v438
  %443 = vrot.lane.b32.xlu0 %v439, 64
  %v444 = vpop.permute.xlu0 %443
  %445 = vrot.lane.b32.xlu0 %v440, 64
  %v446 = vpop.permute.xlu0 %445
  %v449 = vmul.f32 %v403, %v444
  %v450 = vmul.f32 %v405, %v446
  %v453 = vrot.slane %v438, 7
  %v454 = vsel %vm149, %v453, %v437
  %455 = vrot.lane.b32.xlu0 %v454, 96
  %v456 = vpop.permute.xlu0 %455
  %458 = vst.msk [vmem:[#allocation3] sm:$0x3] %vm154, %v456
  %v461 = vrot.slane %v450, 7
  %v462 = vsel %vm149, %v461, %v449
  %463 = vrot.lane.b32.xlu0 %v462, 32
  %v464 = vpop.permute.xlu0 %463
  %466 = vst.msk [vmem:[#allocation2] sm:$0x3] %vm154, %v464
  %v467 = vpack.c.bf16 %v449, %v449
  %v468 = vpack.c.bf16 %v450, %v450
  %v471 = vunpack.c.l.b16 %v467
  %v472 = vunpack.c.l.b16 %v468
  %v473 = vpack.c.b16 %v471, %v471
  %v474 = vpack.c.b16 %v472, %v472
  %v475 = vrot.slane %v473, 7
  %v476 = vrot.slane %v474, 7
  %477 = vrot.lane.b32.xlu0 %v475, 32
  %v478 = vpop.permute.xlu0 %477
  %479 = vrot.lane.b32.xlu0 %v476, 32
  %v480 = vpop.permute.xlu0 %479
  %vm483 = vcmask 254977
  %vm484 = vsmask.f32 1280
  %vm485 = vmand %vm483, %vm484
  %v486 = vld [vmem:[%s2] sm:$0x2]
  %v487 = vsel %vm485, %v478, %v486
  %488 = vst [vmem:[%s2] sm:$0x2] %v487
  %v489 = vld [vmem:[%s2 + $0x4] sm:$0x2]
  %v490 = vsel %vm485, %v480, %v489
  %491 = vst [vmem:[%s2 + $0x4] sm:$0x2] %v490
  %v492 = vld [vmem:[%s0 + $0x3] sm:$0x1]
  %v493 = vld [vmem:[%s0 + $0xb] sm:$0x1]
  %v494 = vld [vmem:[#allocation2] sm:$0x3]
  %v495 = vpack.c.bf16 %v494, %v494
  %v497 = vsel %vm39, %v495, 0
  %499 = vmatprep.subr.bf16.mxu0 0
  %500 = vmatpush1.bf16.msra.mxu0 %v35
  %501 = vmatprep.subr.bf16.mxu0 0
  %502 = vmatpush1.bf16.msra.mxu0 %v36
  %503 = vmatprep.subr.bf16.mxu0 0
  %504 = vmatpush1.bf16.msra.mxu0 0
  %505 = vmatprep.subr.bf16.mxu0 0
  %506 = vmatpush1.bf16.msra.mxu0 0
  %507 = vmatprep.subr.bf16.mxu0 0
  %508 = vmatpush1.bf16.msra.mxu0 0
  %509 = vmatprep.subr.bf16.mxu0 0
  %510 = vmatpush1.bf16.msra.mxu0 0
  %511 = vmatprep.subr.bf16.mxu0 0
  %512 = vmatpush1.bf16.msra.mxu0 0
  %513 = vmatprep.subr.bf16.mxu0 0
  %514 = vmatpush1.bf16.msra.mxu0 0
  %515 = vmatprep.subr.bf16.mxu0 0
  %516 = vmatpush1.bf16.msra.mxu0 0
  %517 = vmatprep.subr.bf16.mxu0 0
  %518 = vmatpush1.bf16.msra.mxu0 0
  %519 = vmatprep.subr.bf16.mxu0 0
  %520 = vmatpush1.bf16.msra.mxu0 0
  %521 = vmatprep.subr.bf16.mxu0 0
  %522 = vmatpush1.bf16.msra.mxu0 0
  %523 = vmatprep.subr.bf16.mxu0 0
  %524 = vmatpush1.bf16.msra.mxu0 0
  %525 = vmatprep.subr.bf16.mxu0 0
  %526 = vmatpush1.bf16.msra.mxu0 0
  %527 = vmatprep.subr.bf16.mxu0 0
  %528 = vmatpush1.bf16.msra.mxu0 0
  %529 = vmatprep.subr.bf16.mxu0 0
  %530 = vmatpush1.bf16.msra.mxu0 0
  %531 = vmatprep.mubr.bf16.mxu0 0
  %532 = vmatmul.mubr.bf16.gmra.mrb[0].mxu0 %v497
  %v533 = vpop.f32.mrb[0].mxu0
  %v534 = vadd.f32 0.0, %v533
  %v535 = vpop.f32.mrb[0].mxu0
  %v536 = vpop.f32.mrb[0].mxu0
  %v537 = vpop.f32.mrb[0].mxu0
  %538 = vdwg.mxu0
  %v540 = vrot.slane %v534, 1
  %v543 = vadd.f32 %v492, %v534
  %v544 = vadd.f32 %v493, %v540
  %v545 = vxor.u32 %v543, 2147483648
  %v546 = vxor.u32 %v544, 2147483648
  %v547 = vmul.f32 %v545, 1.442695
  %v548 = vpow.pop %v547
  %v549 = vmul.f32 %v546, 1.442695
  %v550 = vpow.pop %v549
  %v551 = vadd.f32 %v548, 1.0
  %v552 = vadd.f32 %v550, 1.0
  %v553 = vrcp.pop %v551
  %v554 = vmul.f32 1.0, %v553
  %v555 = vrcp.pop %v552
  %v556 = vmul.f32 1.0, %v555
  %v557 = vtanh.pop %v543
  %v558 = vtanh.pop %v544
  %v559 = vld [vmem:[#allocation3] sm:$0x3]
  %v561 = vrot.slane %v559, 1
  %562 = vrot.lane.b32.xlu0 %v559, 32
  %v563 = vpop.permute.xlu0 %562
  %564 = vrot.lane.b32.xlu0 %v561, 32
  %v565 = vpop.permute.xlu0 %564
  %v568 = vmul.f32 %v554, %v563
  %v569 = vmul.f32 %v556, %v565
  %572 = vrot.lane.b32.xlu0 %v557, 64
  %v573 = vpop.permute.xlu0 %572
  %574 = vrot.lane.b32.xlu0 %v558, 64
  %v575 = vpop.permute.xlu0 %574
  %v578 = vmul.f32 %v554, %v573
  %v579 = vmul.f32 %v556, %v575
  %582 = vrot.lane.b32.xlu0 %v578, 32
  %v583 = vpop.permute.xlu0 %582
  %584 = vrot.lane.b32.xlu0 %v579, 32
  %v585 = vpop.permute.xlu0 %584
  %v588 = vadd.f32 %v568, %v583
  %v589 = vadd.f32 %v569, %v585
  %v590 = vtanh.pop %v588
  %v591 = vtanh.pop %v589
  %594 = vrot.lane.b32.xlu0 %v590, 64
  %v595 = vpop.permute.xlu0 %594
  %596 = vrot.lane.b32.xlu0 %v591, 64
  %v597 = vpop.permute.xlu0 %596
  %v600 = vmul.f32 %v554, %v595
  %v601 = vmul.f32 %v556, %v597
  %v604 = vrot.slane %v589, 7
  %v605 = vsel %vm149, %v604, %v588
  %606 = vrot.lane.b32.xlu0 %v605, 96
  %v607 = vpop.permute.xlu0 %606
  %609 = vst.msk [vmem:[#allocation3] sm:$0x3] %vm154, %v607
  %v612 = vrot.slane %v601, 7
  %v613 = vsel %vm149, %v612, %v600
  %614 = vrot.lane.b32.xlu0 %v613, 32
  %v615 = vpop.permute.xlu0 %614
  %617 = vst.msk [vmem:[#allocation2] sm:$0x3] %vm154, %v615
  %v618 = vpack.c.bf16 %v600, %v600
  %v619 = vpack.c.bf16 %v601, %v601
  %v622 = vunpack.c.l.b16 %v618
  %v623 = vunpack.c.l.b16 %v619
  %v624 = vpack.c.b16 %v622, %v622
  %v625 = vpack.c.b16 %v623, %v623
  %v627 = vshll.u32 %v624, 16
  %v629 = vrot.slane %v627, 7
  %v631 = vshll.u32 %v625, 16
  %v633 = vrot.slane %v631, 7
  %634 = vrot.lane.b32.xlu0 %v629, 32
  %v635 = vpop.permute.xlu0 %634
  %636 = vrot.lane.b32.xlu0 %v633, 32
  %v637 = vpop.permute.xlu0 %636
  %vm640 = vsmask.f32 7942
  %vm641 = vmand %vm483, %vm640
  %v642 = vld [vmem:[%s2] sm:$0x2]
  %v643 = vsel %vm641, %v635, %v642
  %644 = vst [vmem:[%s2] sm:$0x2] %v643
  %v645 = vld [vmem:[%s2 + $0x4] sm:$0x2]
  %v646 = vsel %vm641, %v637, %v645
  %647 = vst [vmem:[%s2 + $0x4] sm:$0x2] %v646
  %v648 = vld [vmem:[%s0 + $0x4] sm:$0x1]
  %v649 = vld [vmem:[%s0 + $0xc] sm:$0x1]
  %v650 = vld [vmem:[#allocation2] sm:$0x3]
  %v651 = vpack.c.bf16 %v650, %v650
  %v653 = vsel %vm39, %v651, 0
  %655 = vmatprep.subr.bf16.mxu0 0
  %656 = vmatpush1.bf16.msra.mxu0 %v35
  %657 = vmatprep.subr.bf16.mxu0 0
  %658 = vmatpush1.bf16.msra.mxu0 %v36
  %659 = vmatprep.subr.bf16.mxu0 0
  %660 = vmatpush1.bf16.msra.mxu0 0
  %661 = vmatprep.subr.bf16.mxu0 0
  %662 = vmatpush1.bf16.msra.mxu0 0
  %663 = vmatprep.subr.bf16.mxu0 0
  %664 = vmatpush1.bf16.msra.mxu0 0
  %665 = vmatprep.subr.bf16.mxu0 0
  %666 = vmatpush1.bf16.msra.mxu0 0
  %667 = vmatprep.subr.bf16.mxu0 0
  %668 = vmatpush1.bf16.msra.mxu0 0
  %669 = vmatprep.subr.bf16.mxu0 0
  %670 = vmatpush1.bf16.msra.mxu0 0
  %671 = vmatprep.subr.bf16.mxu0 0
  %672 = vmatpush1.bf16.msra.mxu0 0
  %673 = vmatprep.subr.bf16.mxu0 0
  %674 = vmatpush1.bf16.msra.mxu0 0
  %675 = vmatprep.subr.bf16.mxu0 0
  %676 = vmatpush1.bf16.msra.mxu0 0
  %677 = vmatprep.subr.bf16.mxu0 0
  %678 = vmatpush1.bf16.msra.mxu0 0
  %679 = vmatprep.subr.bf16.mxu0 0
  %680 = vmatpush1.bf16.msra.mxu0 0
  %681 = vmatprep.subr.bf16.mxu0 0
  %682 = vmatpush1.bf16.msra.mxu0 0
  %683 = vmatprep.subr.bf16.mxu0 0
  %684 = vmatpush1.bf16.msra.mxu0 0
  %685 = vmatprep.subr.bf16.mxu0 0
  %686 = vmatpush1.bf16.msra.mxu0 0
  %687 = vmatprep.mubr.bf16.mxu0 0
  %688 = vmatmul.mubr.bf16.gmra.mrb[0].mxu0 %v653
  %v689 = vpop.f32.mrb[0].mxu0
  %v690 = vadd.f32 0.0, %v689
  %v691 = vpop.f32.mrb[0].mxu0
  %v692 = vpop.f32.mrb[0].mxu0
  %v693 = vpop.f32.mrb[0].mxu0
  %694 = vdwg.mxu0
  %v696 = vrot.slane %v690, 1
  %v699 = vadd.f32 %v648, %v690
  %v700 = vadd.f32 %v649, %v696
  %v701 = vxor.u32 %v699, 2147483648
  %v702 = vxor.u32 %v700, 2147483648
  %v703 = vmul.f32 %v701, 1.442695
  %v704 = vpow.pop %v703
  %v705 = vmul.f32 %v702, 1.442695
  %v706 = vpow.pop %v705
  %v707 = vadd.f32 %v704, 1.0
  %v708 = vadd.f32 %v706, 1.0
  %v709 = vrcp.pop %v707
  %v710 = vmul.f32 1.0, %v709
  %v711 = vrcp.pop %v708
  %v712 = vmul.f32 1.0, %v711
  %v713 = vtanh.pop %v699
  %v714 = vtanh.pop %v700
  %v715 = vld [vmem:[#allocation3] sm:$0x3]
  %v717 = vrot.slane %v715, 1
  %718 = vrot.lane.b32.xlu0 %v715, 32
  %v719 = vpop.permute.xlu0 %718
  %720 = vrot.lane.b32.xlu0 %v717, 32
  %v721 = vpop.permute.xlu0 %720
  %v724 = vmul.f32 %v710, %v719
  %v725 = vmul.f32 %v712, %v721
  %728 = vrot.lane.b32.xlu0 %v713, 64
  %v729 = vpop.permute.xlu0 %728
  %730 = vrot.lane.b32.xlu0 %v714, 64
  %v731 = vpop.permute.xlu0 %730
  %v734 = vmul.f32 %v710, %v729
  %v735 = vmul.f32 %v712, %v731
  %738 = vrot.lane.b32.xlu0 %v734, 32
  %v739 = vpop.permute.xlu0 %738
  %740 = vrot.lane.b32.xlu0 %v735, 32
  %v741 = vpop.permute.xlu0 %740
  %v744 = vadd.f32 %v724, %v739
  %v745 = vadd.f32 %v725, %v741
  %v746 = vtanh.pop %v744
  %v747 = vtanh.pop %v745
  %750 = vrot.lane.b32.xlu0 %v746, 64
  %v751 = vpop.permute.xlu0 %750
  %752 = vrot.lane.b32.xlu0 %v747, 64
  %v753 = vpop.permute.xlu0 %752
  %v756 = vmul.f32 %v710, %v751
  %v757 = vmul.f32 %v712, %v753
  %v760 = vrot.slane %v745, 7
  %v761 = vsel %vm149, %v760, %v744
  %762 = vrot.lane.b32.xlu0 %v761, 96
  %v763 = vpop.permute.xlu0 %762
  %765 = vst.msk [vmem:[#allocation3] sm:$0x3] %vm154, %v763
  %v768 = vrot.slane %v757, 7
  %v769 = vsel %vm149, %v768, %v756
  %770 = vrot.lane.b32.xlu0 %v769, 32
  %v771 = vpop.permute.xlu0 %770
  %773 = vst.msk [vmem:[#allocation2] sm:$0x3] %vm154, %v771
  %v774 = vpack.c.bf16 %v756, %v756
  %v775 = vpack.c.bf16 %v757, %v757
  %v778 = vunpack.c.l.b16 %v774
  %v779 = vunpack.c.l.b16 %v775
  %v780 = vpack.c.b16 %v778, %v778
  %v781 = vpack.c.b16 %v779, %v779
  %v782 = vrot.slane %v780, 6
  %v783 = vrot.slane %v781, 6
  %784 = vrot.lane.b32.xlu0 %v782, 32
  %v785 = vpop.permute.xlu0 %784
  %786 = vrot.lane.b32.xlu0 %v783, 32
  %v787 = vpop.permute.xlu0 %786
  %vm790 = vcmask 256002
  %vm791 = vsmask.f32 2304
  %vm792 = vmand %vm790, %vm791
  %v793 = vld [vmem:[%s2] sm:$0x4]
  %v794 = vsel %vm792, %v785, %v793
  %795 = vst [vmem:[%s2] sm:$0x4] %v794
  %v796 = vld [vmem:[%s2 + $0x4] sm:$0x4]
  %v797 = vsel %vm792, %v787, %v796
  %798 = vst [vmem:[%s2 + $0x4] sm:$0x4] %v797
  %v799 = vld [vmem:[%s0 + $0x5] sm:$0x1]
  %v800 = vld [vmem:[%s0 + $0xd] sm:$0x1]
  %v801 = vld [vmem:[#allocation2] sm:$0x3]
  %v802 = vpack.c.bf16 %v801, %v801
  %v804 = vsel %vm39, %v802, 0
  %806 = vmatprep.subr.bf16.mxu0 0
  %807 = vmatpush1.bf16.msra.mxu0 %v35
  %808 = vmatprep.subr.bf16.mxu0 0
  %809 = vmatpush1.bf16.msra.mxu0 %v36
  %810 = vmatprep.subr.bf16.mxu0 0
  %811 = vmatpush1.bf16.msra.mxu0 0
  %812 = vmatprep.subr.bf16.mxu0 0
  %813 = vmatpush1.bf16.msra.mxu0 0
  %814 = vmatprep.subr.bf16.mxu0 0
  %815 = vmatpush1.bf16.msra.mxu0 0
  %816 = vmatprep.subr.bf16.mxu0 0
  %817 = vmatpush1.bf16.msra.mxu0 0
  %818 = vmatprep.subr.bf16.mxu0 0
  %819 = vmatpush1.bf16.msra.mxu0 0
  %820 = vmatprep.subr.bf16.mxu0 0
  %821 = vmatpush1.bf16.msra.mxu0 0
  %822 = vmatprep.subr.bf16.mxu0 0
  %823 = vmatpush1.bf16.msra.mxu0 0
  %824 = vmatprep.subr.bf16.mxu0 0
  %825 = vmatpush1.bf16.msra.mxu0 0
  %826 = vmatprep.subr.bf16.mxu0 0
  %827 = vmatpush1.bf16.msra.mxu0 0
  %828 = vmatprep.subr.bf16.mxu0 0
  %829 = vmatpush1.bf16.msra.mxu0 0
  %830 = vmatprep.subr.bf16.mxu0 0
  %831 = vmatpush1.bf16.msra.mxu0 0
  %832 = vmatprep.subr.bf16.mxu0 0
  %833 = vmatpush1.bf16.msra.mxu0 0
  %834 = vmatprep.subr.bf16.mxu0 0
  %835 = vmatpush1.bf16.msra.mxu0 0
  %836 = vmatprep.subr.bf16.mxu0 0
  %837 = vmatpush1.bf16.msra.mxu0 0
  %838 = vmatprep.mubr.bf16.mxu0 0
  %839 = vmatmul.mubr.bf16.gmra.mrb[0].mxu0 %v804
  %v840 = vpop.f32.mrb[0].mxu0
  %v841 = vadd.f32 0.0, %v840
  %v842 = vpop.f32.mrb[0].mxu0
  %v843 = vpop.f32.mrb[0].mxu0
  %v844 = vpop.f32.mrb[0].mxu0
  %845 = vdwg.mxu0
  %v847 = vrot.slane %v841, 1
  %v850 = vadd.f32 %v799, %v841
  %v851 = vadd.f32 %v800, %v847
  %v852 = vxor.u32 %v850, 2147483648
  %v853 = vxor.u32 %v851, 2147483648
  %v854 = vmul.f32 %v852, 1.442695
  %v855 = vpow.pop %v854
  %v856 = vmul.f32 %v853, 1.442695
  %v857 = vpow.pop %v856
  %v858 = vadd.f32 %v855, 1.0
  %v859 = vadd.f32 %v857, 1.0
  %v860 = vrcp.pop %v858
  %v861 = vmul.f32 1.0, %v860
  %v862 = vrcp.pop %v859
  %v863 = vmul.f32 1.0, %v862
  %v864 = vtanh.pop %v850
  %v865 = vtanh.pop %v851
  %v866 = vld [vmem:[#allocation3] sm:$0x3]
  %v868 = vrot.slane %v866, 1
  %869 = vrot.lane.b32.xlu0 %v866, 32
  %v870 = vpop.permute.xlu0 %869
  %871 = vrot.lane.b32.xlu0 %v868, 32
  %v872 = vpop.permute.xlu0 %871
  %v875 = vmul.f32 %v861, %v870
  %v876 = vmul.f32 %v863, %v872
  %879 = vrot.lane.b32.xlu0 %v864, 64
  %v880 = vpop.permute.xlu0 %879
  %881 = vrot.lane.b32.xlu0 %v865, 64
  %v882 = vpop.permute.xlu0 %881
  %v885 = vmul.f32 %v861, %v880
  %v886 = vmul.f32 %v863, %v882
  %889 = vrot.lane.b32.xlu0 %v885, 32
  %v890 = vpop.permute.xlu0 %889
  %891 = vrot.lane.b32.xlu0 %v886, 32
  %v892 = vpop.permute.xlu0 %891
  %v895 = vadd.f32 %v875, %v890
  %v896 = vadd.f32 %v876, %v892
  %v897 = vtanh.pop %v895
  %v898 = vtanh.pop %v896
  %901 = vrot.lane.b32.xlu0 %v897, 64
  %v902 = vpop.permute.xlu0 %901
  %903 = vrot.lane.b32.xlu0 %v898, 64
  %v904 = vpop.permute.xlu0 %903
  %v907 = vmul.f32 %v861, %v902
  %v908 = vmul.f32 %v863, %v904
  %v911 = vrot.slane %v896, 7
  %v912 = vsel %vm149, %v911, %v895
  %913 = vrot.lane.b32.xlu0 %v912, 96
  %v914 = vpop.permute.xlu0 %913
  %916 = vst.msk [vmem:[#allocation3] sm:$0x3] %vm154, %v914
  %v919 = vrot.slane %v908, 7
  %v920 = vsel %vm149, %v919, %v907
  %921 = vrot.lane.b32.xlu0 %v920, 32
  %v922 = vpop.permute.xlu0 %921
  %924 = vst.msk [vmem:[#allocation2] sm:$0x3] %vm154, %v922
  %v925 = vpack.c.bf16 %v907, %v907
  %v926 = vpack.c.bf16 %v908, %v908
  %v929 = vunpack.c.l.b16 %v925
  %v930 = vunpack.c.l.b16 %v926
  %v931 = vpack.c.b16 %v929, %v929
  %v932 = vpack.c.b16 %v930, %v930
  %v934 = vshll.u32 %v931, 16
  %v936 = vrot.slane %v934, 6
  %v938 = vshll.u32 %v932, 16
  %v940 = vrot.slane %v938, 6
  %941 = vrot.lane.b32.xlu0 %v936, 32
  %v942 = vpop.permute.xlu0 %941
  %943 = vrot.lane.b32.xlu0 %v940, 32
  %v944 = vpop.permute.xlu0 %943
  %vm947 = vsmask.f32 7946
  %vm948 = vmand %vm790, %vm947
  %v949 = vld [vmem:[%s2] sm:$0x4]
  %v950 = vsel %vm948, %v942, %v949
  %951 = vst [vmem:[%s2] sm:$0x4] %v950
  %v952 = vld [vmem:[%s2 + $0x4] sm:$0x4]
  %v953 = vsel %vm948, %v944, %v952
  %954 = vst [vmem:[%s2 + $0x4] sm:$0x4] %v953
  %v955 = vld [vmem:[%s0 + $0x6] sm:$0x1]
  %v956 = vld [vmem:[%s0 + $0xe] sm:$0x1]
  %v957 = vld [vmem:[#allocation2] sm:$0x3]
  %v958 = vpack.c.bf16 %v957, %v957
  %v960 = vsel %vm39, %v958, 0
  %962 = vmatprep.subr.bf16.mxu0 0
  %963 = vmatpush1.bf16.msra.mxu0 %v35
  %964 = vmatprep.subr.bf16.mxu0 0
  %965 = vmatpush1.bf16.msra.mxu0 %v36
  %966 = vmatprep.subr.bf16.mxu0 0
  %967 = vmatpush1.bf16.msra.mxu0 0
  %968 = vmatprep.subr.bf16.mxu0 0
  %969 = vmatpush1.bf16.msra.mxu0 0
  %970 = vmatprep.subr.bf16.mxu0 0
  %971 = vmatpush1.bf16.msra.mxu0 0
  %972 = vmatprep.subr.bf16.mxu0 0
  %973 = vmatpush1.bf16.msra.mxu0 0
  %974 = vmatprep.subr.bf16.mxu0 0
  %975 = vmatpush1.bf16.msra.mxu0 0
  %976 = vmatprep.subr.bf16.mxu0 0
  %977 = vmatpush1.bf16.msra.mxu0 0
  %978 = vmatprep.subr.bf16.mxu0 0
  %979 = vmatpush1.bf16.msra.mxu0 0
  %980 = vmatprep.subr.bf16.mxu0 0
  %981 = vmatpush1.bf16.msra.mxu0 0
  %982 = vmatprep.subr.bf16.mxu0 0
  %983 = vmatpush1.bf16.msra.mxu0 0
  %984 = vmatprep.subr.bf16.mxu0 0
  %985 = vmatpush1.bf16.msra.mxu0 0
  %986 = vmatprep.subr.bf16.mxu0 0
  %987 = vmatpush1.bf16.msra.mxu0 0
  %988 = vmatprep.subr.bf16.mxu0 0
  %989 = vmatpush1.bf16.msra.mxu0 0
  %990 = vmatprep.subr.bf16.mxu0 0
  %991 = vmatpush1.bf16.msra.mxu0 0
  %992 = vmatprep.subr.bf16.mxu0 0
  %993 = vmatpush1.bf16.msra.mxu0 0
  %994 = vmatprep.mubr.bf16.mxu0 0
  %995 = vmatmul.mubr.bf16.gmra.mrb[0].mxu0 %v960
  %v996 = vpop.f32.mrb[0].mxu0
  %v997 = vadd.f32 0.0, %v996
  %v998 = vpop.f32.mrb[0].mxu0
  %v999 = vpop.f32.mrb[0].mxu0
  %v1000 = vpop.f32.mrb[0].mxu0
  %1001 = vdwg.mxu0
  %v1003 = vrot.slane %v997, 1
  %v1006 = vadd.f32 %v955, %v997
  %v1007 = vadd.f32 %v956, %v1003
  %v1008 = vxor.u32 %v1006, 2147483648
  %v1009 = vxor.u32 %v1007, 2147483648
  %v1010 = vmul.f32 %v1008, 1.442695
  %v1011 = vpow.pop %v1010
  %v1012 = vmul.f32 %v1009, 1.442695
  %v1013 = vpow.pop %v1012
  %v1014 = vadd.f32 %v1011, 1.0
  %v1015 = vadd.f32 %v1013, 1.0
  %v1016 = vrcp.pop %v1014
  %v1017 = vmul.f32 1.0, %v1016
  %v1018 = vrcp.pop %v1015
  %v1019 = vmul.f32 1.0, %v1018
  %v1020 = vtanh.pop %v1006
  %v1021 = vtanh.pop %v1007
  %v1022 = vld [vmem:[#allocation3] sm:$0x3]
  %v1024 = vrot.slane %v1022, 1
  %1025 = vrot.lane.b32.xlu0 %v1022, 32
  %v1026 = vpop.permute.xlu0 %1025
  %1027 = vrot.lane.b32.xlu0 %v1024, 32
  %v1028 = vpop.permute.xlu0 %1027
  %v1031 = vmul.f32 %v1017, %v1026
  %v1032 = vmul.f32 %v1019, %v1028
  %1035 = vrot.lane.b32.xlu0 %v1020, 64
  %v1036 = vpop.permute.xlu0 %1035
  %1037 = vrot.lane.b32.xlu0 %v1021, 64
  %v1038 = vpop.permute.xlu0 %1037
  %v1041 = vmul.f32 %v1017, %v1036
  %v1042 = vmul.f32 %v1019, %v1038
  %1045 = vrot.lane.b32.xlu0 %v1041, 32
  %v1046 = vpop.permute.xlu0 %1045
  %1047 = vrot.lane.b32.xlu0 %v1042, 32
  %v1048 = vpop.permute.xlu0 %1047
  %v1051 = vadd.f32 %v1031, %v1046
  %v1052 = vadd.f32 %v1032, %v1048
  %v1053 = vtanh.pop %v1051
  %v1054 = vtanh.pop %v1052
  %1057 = vrot.lane.b32.xlu0 %v1053, 64
  %v1058 = vpop.permute.xlu0 %1057
  %1059 = vrot.lane.b32.xlu0 %v1054, 64
  %v1060 = vpop.permute.xlu0 %1059
  %v1063 = vmul.f32 %v1017, %v1058
  %v1064 = vmul.f32 %v1019, %v1060
  %v1067 = vrot.slane %v1052, 7
  %v1068 = vsel %vm149, %v1067, %v1051
  %1069 = vrot.lane.b32.xlu0 %v1068, 96
  %v1070 = vpop.permute.xlu0 %1069
  %1072 = vst.msk [vmem:[#allocation3] sm:$0x3] %vm154, %v1070
  %v1075 = vrot.slane %v1064, 7
  %v1076 = vsel %vm149, %v1075, %v1063
  %1077 = vrot.lane.b32.xlu0 %v1076, 32
  %v1078 = vpop.permute.xlu0 %1077
  %1080 = vst.msk [vmem:[#allocation2] sm:$0x3] %vm154, %v1078
  %v1081 = vpack.c.bf16 %v1063, %v1063
  %v1082 = vpack.c.bf16 %v1064, %v1064
  %v1085 = vunpack.c.l.b16 %v1081
  %v1086 = vunpack.c.l.b16 %v1082
  %v1087 = vpack.c.b16 %v1085, %v1085
  %v1088 = vpack.c.b16 %v1086, %v1086
  %v1089 = vrot.slane %v1087, 5
  %v1090 = vrot.slane %v1088, 5
  %1091 = vrot.lane.b32.xlu0 %v1089, 32
  %v1092 = vpop.permute.xlu0 %1091
  %1093 = vrot.lane.b32.xlu0 %v1090, 32
  %v1094 = vpop.permute.xlu0 %1093
  %vm1097 = vcmask 257027
  %vm1098 = vsmask.f32 3328
  %vm1099 = vmand %vm1097, %vm1098
  %v1100 = vld [vmem:[%s2] sm:$0x8]
  %v1101 = vsel %vm1099, %v1092, %v1100
  %1102 = vst [vmem:[%s2] sm:$0x8] %v1101
  %v1103 = vld [vmem:[%s2 + $0x4] sm:$0x8]
  %v1104 = vsel %vm1099, %v1094, %v1103
  %1105 = vst [vmem:[%s2 + $0x4] sm:$0x8] %v1104
  %v1106 = vld [vmem:[%s0 + $0x7] sm:$0x1]
  %v1107 = vld [vmem:[%s0 + $0xf] sm:$0x1]
  %v1108 = vld [vmem:[#allocation2] sm:$0x3]
  %v1109 = vpack.c.bf16 %v1108, %v1108
  %v1111 = vsel %vm39, %v1109, 0
  %1113 = vmatprep.subr.bf16.mxu0 0
  %1114 = vmatpush1.bf16.msra.mxu0 %v35
  %1115 = vmatprep.subr.bf16.mxu0 0
  %1116 = vmatpush1.bf16.msra.mxu0 %v36
  %1117 = vmatprep.subr.bf16.mxu0 0
  %1118 = vmatpush1.bf16.msra.mxu0 0
  %1119 = vmatprep.subr.bf16.mxu0 0
  %1120 = vmatpush1.bf16.msra.mxu0 0
  %1121 = vmatprep.subr.bf16.mxu0 0
  %1122 = vmatpush1.bf16.msra.mxu0 0
  %1123 = vmatprep.subr.bf16.mxu0 0
  %1124 = vmatpush1.bf16.msra.mxu0 0
  %1125 = vmatprep.subr.bf16.mxu0 0
  %1126 = vmatpush1.bf16.msra.mxu0 0
  %1127 = vmatprep.subr.bf16.mxu0 0
  %1128 = vmatpush1.bf16.msra.mxu0 0
  %1129 = vmatprep.subr.bf16.mxu0 0
  %1130 = vmatpush1.bf16.msra.mxu0 0
  %1131 = vmatprep.subr.bf16.mxu0 0
  %1132 = vmatpush1.bf16.msra.mxu0 0
  %1133 = vmatprep.subr.bf16.mxu0 0
  %1134 = vmatpush1.bf16.msra.mxu0 0
  %1135 = vmatprep.subr.bf16.mxu0 0
  %1136 = vmatpush1.bf16.msra.mxu0 0
  %1137 = vmatprep.subr.bf16.mxu0 0
  %1138 = vmatpush1.bf16.msra.mxu0 0
  %1139 = vmatprep.subr.bf16.mxu0 0
  %1140 = vmatpush1.bf16.msra.mxu0 0
  %1141 = vmatprep.subr.bf16.mxu0 0
  %1142 = vmatpush1.bf16.msra.mxu0 0
  %1143 = vmatprep.subr.bf16.mxu0 0
  %1144 = vmatpush1.bf16.msra.mxu0 0
  %1145 = vmatprep.mubr.bf16.mxu0 0
  %1146 = vmatmul.mubr.bf16.gmra.mrb[0].mxu0 %v1111
  %v1147 = vpop.f32.mrb[0].mxu0
  %v1148 = vadd.f32 0.0, %v1147
  %v1149 = vpop.f32.mrb[0].mxu0
  %v1150 = vpop.f32.mrb[0].mxu0
  %v1151 = vpop.f32.mrb[0].mxu0
  %1152 = vdwg.mxu0
  %v1154 = vrot.slane %v1148, 1
  %v1157 = vadd.f32 %v1106, %v1148
  %v1158 = vadd.f32 %v1107, %v1154
  %v1159 = vxor.u32 %v1157, 2147483648
  %v1160 = vxor.u32 %v1158, 2147483648
  %v1161 = vmul.f32 %v1159, 1.442695
  %v1162 = vpow.pop %v1161
  %v1163 = vmul.f32 %v1160, 1.442695
  %v1164 = vpow.pop %v1163
  %v1165 = vadd.f32 %v1162, 1.0
  %v1166 = vadd.f32 %v1164, 1.0
  %v1167 = vrcp.pop %v1165
  %v1168 = vmul.f32 1.0, %v1167
  %v1169 = vrcp.pop %v1166
  %v1170 = vmul.f32 1.0, %v1169
  %v1171 = vtanh.pop %v1157
  %v1172 = vtanh.pop %v1158
  %v1173 = vld [vmem:[#allocation3] sm:$0x3]
  %v1175 = vrot.slane %v1173, 1
  %1176 = vrot.lane.b32.xlu0 %v1173, 32
  %v1177 = vpop.permute.xlu0 %1176
  %1178 = vrot.lane.b32.xlu0 %v1175, 32
  %v1179 = vpop.permute.xlu0 %1178
  %v1182 = vmul.f32 %v1168, %v1177
  %v1183 = vmul.f32 %v1170, %v1179
  %1186 = vrot.lane.b32.xlu0 %v1171, 64
  %v1187 = vpop.permute.xlu0 %1186
  %1188 = vrot.lane.b32.xlu0 %v1172, 64
  %v1189 = vpop.permute.xlu0 %1188
  %v1192 = vmul.f32 %v1168, %v1187
  %v1193 = vmul.f32 %v1170, %v1189
  %1196 = vrot.lane.b32.xlu0 %v1192, 32
  %v1197 = vpop.permute.xlu0 %1196
  %1198 = vrot.lane.b32.xlu0 %v1193, 32
  %v1199 = vpop.permute.xlu0 %1198
  %v1202 = vadd.f32 %v1182, %v1197
  %v1203 = vadd.f32 %v1183, %v1199
  %v1204 = vtanh.pop %v1202
  %v1205 = vtanh.pop %v1203
  %1208 = vrot.lane.b32.xlu0 %v1204, 64
  %v1209 = vpop.permute.xlu0 %1208
  %1210 = vrot.lane.b32.xlu0 %v1205, 64
  %v1211 = vpop.permute.xlu0 %1210
  %v1214 = vmul.f32 %v1168, %v1209
  %v1215 = vmul.f32 %v1170, %v1211
  %v1218 = vrot.slane %v1203, 7
  %v1219 = vsel %vm149, %v1218, %v1202
  %1220 = vrot.lane.b32.xlu0 %v1219, 96
  %v1221 = vpop.permute.xlu0 %1220
  %1223 = vst.msk [vmem:[#allocation3] sm:$0x3] %vm154, %v1221
  %v1226 = vrot.slane %v1215, 7
  %v1227 = vsel %vm149, %v1226, %v1214
  %1228 = vrot.lane.b32.xlu0 %v1227, 32
  %v1229 = vpop.permute.xlu0 %1228
  %1231 = vst.msk [vmem:[#allocation2] sm:$0x3] %vm154, %v1229
  %v1232 = vpack.c.bf16 %v1214, %v1214
  %v1233 = vpack.c.bf16 %v1215, %v1215
  %v1236 = vunpack.c.l.b16 %v1232
  %v1237 = vunpack.c.l.b16 %v1233
  %v1238 = vpack.c.b16 %v1236, %v1236
  %v1239 = vpack.c.b16 %v1237, %v1237
  %v1241 = vshll.u32 %v1238, 16
  %v1243 = vrot.slane %v1241, 5
  %v1245 = vshll.u32 %v1239, 16
  %v1247 = vrot.slane %v1245, 5
  %1248 = vrot.lane.b32.xlu0 %v1243, 32
  %v1249 = vpop.permute.xlu0 %1248
  %1250 = vrot.lane.b32.xlu0 %v1247, 32
  %v1251 = vpop.permute.xlu0 %1250
  %vm1254 = vsmask.f32 7950
  %vm1255 = vmand %vm1097, %vm1254
  %v1256 = vld [vmem:[%s2] sm:$0x8]
  %v1257 = vsel %vm1255, %v1249, %v1256
  %1258 = vst [vmem:[%s2] sm:$0x8] %v1257
  %v1259 = vld [vmem:[%s2 + $0x4] sm:$0x8]
  %v1260 = vsel %vm1255, %v1251, %v1259
  %1261 = vst [vmem:[%s2 + $0x4] sm:$0x8] %v1260
  // Predicated region
  $region14: #{decoder_lstm_forward.4} parent=0 // pred_check
    _
  $region15: #{decoder_lstm_forward.4} parent=0 // pred_check_branch
    %1263 = sbr.rel (0) target = $region17
  $region16: #{decoder_lstm_forward.4} parent=0 // pred_region
    _
  $region17: #{decoder_lstm_forward.4} parent=0 // pred_fallthru
    _
  // Predicated region
  $region18: #{decoder_lstm_forward.4} parent=0 // pred_check
    _
  $region19: #{decoder_lstm_forward.4} parent=0 // pred_check_branch
    %1265 = sbr.rel (0) target = $region21
  $region20: #{decoder_lstm_forward.4} parent=0 // pred_region
    _
  $region21: #{decoder_lstm_forward.4} parent=0 // pred_fallthru
    _

</llo_original>
